<compile_context>
chip_gen: v7x
topology: tpu7x:2x2x1
jax: 0.10.0
libtpu: 0.0.40
codegen_flags: <defaults>
</compile_context>

<pallas_src>
import jax
import jax.numpy as jnp
from jax.experimental import pallas as pl
from jax.experimental.pallas import tpu as pltpu


def _cff_kernel(gid_ref, valid_ref, x_ref, w1_ref, w3_ref, w2_ref, o_ref, acc_ref):
    # gid_ref   : SMEM (num_blocks,) block -> expert id (used by index_maps only)
    # valid_ref : SMEM (num_blocks,) 1 if the block holds real rows, else 0
    # x_ref     : (BM, D)      expert-sorted token rows of this block (bf16)
    # w1_ref    : (1, BI, D)   w1 i-tile of this block's expert (bf16)
    # w3_ref    : (1, BI, D)   w3 i-tile of this block's expert (bf16)
    # w2_ref    : (1, D, BI)   w2 i-tile of this block's expert (bf16)
    # o_ref     : (BM, D)      f32 output slab
    # acc_ref   : (BM, D)      f32 VMEM accumulator (persists across i-tiles)
    del gid_ref
    b = pl.program_id(0)
    k = pl.program_id(1)
    last_k = pl.num_programs(1) - 1

    @pl.when(valid_ref[b] == 1)          # dead tail blocks: no compute at all
    def _():
        @pl.when(k == 0)
        def _():
            acc_ref[...] = jnp.zeros_like(acc_ref)

        x = x_ref[...]                    # (BM, D)
        w1 = w1_ref[0]                    # (BI, D)
        w3 = w3_ref[0]                    # (BI, D)
        w2 = w2_ref[0]                    # (D, BI)

        dims = (((1,), (1,)), ((), ()))   # contract the trailing dim of both operands

        # h1[m, o] = sum_d x[m, d] * w1[o, d]     (MXU, fp32 accumulation)
        h1 = jax.lax.dot_general(x, w1, dims, preferred_element_type=jnp.float32)
        h3 = jax.lax.dot_general(x, w3, dims, preferred_element_type=jnp.float32)
        act = (h1 * jax.nn.sigmoid(h1)) * h3           # silu(h1) * h3, fp32

        # acc[m, d] += sum_o act[m, o] * w2[d, o]
        acc_ref[...] += jax.lax.dot_general(
            act.astype(w2.dtype), w2, dims, preferred_element_type=jnp.float32)

        @pl.when(k == last_k)
        def _():
            o_ref[...] = acc_ref[...].astype(o_ref.dtype)


def _vmem_limit_bytes():
    # 3/4 of physical VMEM: ~96 MiB on v5e/v6e (128 MiB), ~48 MiB on v7x (64 MiB).
    try:
        cap = int(pltpu.get_tpu_info().vmem_capacity_bytes)
    except Exception:
        cap = 64 * 1024 * 1024            # conservative fallback (v7x physical)
    return min((cap * 3) // 4, 112 * 1024 * 1024)


def conditional_feed_forward(x, expert_indices, w1, w2, w3, *,
                             block_m=256, block_i=512,
                             compute_dtype=jnp.bfloat16):
    """Pallas implementation of ConditionalFeedForward.forward.

    x: [T, D] float32;  expert_indices: [T, A] int32 in [0, E)
    w1, w3: [E, I, D];  w2: [E, D, I]
    returns: [T, A, D] float32

    block_m: rows per grid block (128 on v5e, 256 on v6e/v7x).
    block_i: intermediate-dim tile (lane-aligned divisor of I when < I; tune
             larger, 1024-2048, on v5e/v6e's 128 MiB VMEM).
    """
    T, D = x.shape
    A = expert_indices.shape[1]
    E, I, _ = w1.shape
    TA = T * A

    # ---- tile sizes ----------------------------------------------------------
    block_i = min(block_i, I)
    if block_i < I:
        assert block_i % 128 == 0 and I % block_i == 0, (
            "block_i must be a lane-aligned (x128) divisor of intermediate_size")
    num_i = I // block_i
    last_i = num_i - 1

    # TODO(synk): in production, cast weights once at parameter-load time
    # (bf16, or fp8 + per-channel scales on v7x) instead of per call.
    w1c = w1.astype(compute_dtype)
    w2c = w2.astype(compute_dtype)
    w3c = w3.astype(compute_dtype)

    eidx_flat = expert_indices.reshape(TA).astype(jnp.int32)
    tok_flat = (jnp.arange(TA, dtype=jnp.int32) // A)     # token id of each (token, slot)

    # ---- sort (token, slot) pairs by expert; block-padded grouped layout -----
    sort_idx = jnp.argsort(eidx_flat)                     # (TA,)
    sorted_experts = eidx_flat[sort_idx]
    sorted_tokens = tok_flat[sort_idx]

    counts = jnp.bincount(eidx_flat, length=E).astype(jnp.int32)         # (E,)
    padded_counts = ((counts + block_m - 1) // block_m) * block_m        # (E,)
    zero = jnp.zeros((1,), jnp.int32)
    group_start = jnp.concatenate(
        [zero, jnp.cumsum(padded_counts)[:-1].astype(jnp.int32)])        # (E,)
    count_start = jnp.concatenate(
        [zero, jnp.cumsum(counts)[:-1].astype(jnp.int32)])               # (E,)

    rank = jnp.arange(TA, dtype=jnp.int32) - count_start[sorted_experts]
    dest = group_start[sorted_experts] + rank                            # (TA,)

    # static upper bound: each expert adds at most one partially-filled block
    num_blocks = pl.cdiv(TA, block_m) + E
    padded_rows = num_blocks * block_m

    # expert-sorted, block-padded activations (padding rows are zero; their
    # outputs are never read back).
    x_sorted = (jnp.zeros((padded_rows, D), compute_dtype)
                .at[dest].set(x[sorted_tokens].astype(compute_dtype)))

    # ---- per-block expert id + valid flag (scalar prefetch -> SMEM) ----------
    used_blocks = (jnp.sum(padded_counts) // block_m).astype(jnp.int32)
    block_ids = jnp.arange(num_blocks, dtype=jnp.int32)
    block_valid = (block_ids < used_blocks).astype(jnp.int32)
    # Dead tail blocks point at the *last real* block's expert so the weight
    # index_map repeats and the (large) weight DMAs are skipped entirely.
    clamped_start = jnp.minimum(block_ids, jnp.maximum(used_blocks - 1, 0)) * block_m
    group_end = (group_start + padded_counts).astype(jnp.int32)
    block_expert = jnp.searchsorted(group_end, clamped_start, side='right')
    block_expert = jnp.minimum(block_expert, E - 1).astype(jnp.int32)

    # ---- index maps (prefetch refs are trailing positional args) -------------
    def _x_map(b, k, gid, valid):
        return (b, 0)

    def _w13_map(b, k, gid, valid):
        v = valid[b]
        kk = v * k + (1 - v) * last_i       # dead blocks pin to the resident tile
        return (gid[b], kk, 0)

    def _w2_map(b, k, gid, valid):
        v = valid[b]
        kk = v * k + (1 - v) * last_i
        return (gid[b], 0, kk)

    def _o_map(b, k, gid, valid):
        return (b, 0)

    grid_spec = pltpu.PrefetchScalarGridSpec(
        num_scalar_prefetch=2,                  # block->expert table, block-valid flags
        grid=(num_blocks, num_i),               # reduction axis (I tiles) last
        in_specs=[
            pl.BlockSpec((block_m, D), _x_map),           # token rows (resident over k)
            pl.BlockSpec((1, block_i, D), _w13_map),      # w1 i-tile
            pl.BlockSpec((1, block_i, D), _w13_map),      # w3 i-tile
            pl.BlockSpec((1, D, block_i), _w2_map),       # w2 i-tile
        ],
        out_specs=pl.BlockSpec((block_m, D), _o_map),
        scratch_shapes=[pltpu.VMEM((block_m, D), jnp.float32)],   # fp32 accumulator
    )

    out_padded = pl.pallas_call(
        _cff_kernel,
        out_shape=jax.ShapeDtypeStruct((padded_rows, D), jnp.float32),
        grid_spec=grid_spec,
        compiler_params=pltpu.CompilerParams(
            dimension_semantics=("parallel", "arbitrary"),
            vmem_limit_bytes=_vmem_limit_bytes()),
    )(block_expert, block_valid, x_sorted, w1c, w3c, w2c)

    # scatter results back to the original (token, slot) order
    out_flat = jnp.zeros((TA, D), out_padded.dtype).at[sort_idx].set(out_padded[dest])
    return out_flat.reshape(T, A, D)


def reference(x, expert_indices, w1, w2, w3):
    """Pure-JAX fp32 reference mirroring the PyTorch forward exactly."""
    w1g = w1[expert_indices]            # (T, A, I, D)
    w3g = w3[expert_indices]            # (T, A, I, D)
    w2g = w2[expert_indices]            # (T, A, D, I)
    x1 = jax.nn.silu(jnp.einsum('ti,taoi->tao', x, w1g))
    x3 = jnp.einsum('ti,taoi->tao', x, w3g)
    return jnp.einsum('tao,taio->tai', x1 * x3, w2g)


if __name__ == "__main__":
    # Small shapes consistent with the module: T tokens, top-A experts each.
    T, A = 8, 2          # tokens, activated experts per token
    E, D, I = 4, 32, 64  # num_experts, dim, intermediate_size

    key = jax.random.PRNGKey(0)
    kx, ki, k1, k2, k3 = jax.random.split(key, 5)

    x = jax.random.normal(kx, (T, D), dtype=jnp.float32)
    expert_indices = jax.random.randint(ki, (T, A), 0, E, dtype=jnp.int32)
    # Deterministic synthetic parameters (torch.empty in the module -> init here).
    w1 = 0.05 * jax.random.normal(k1, (E, I, D), dtype=jnp.float32)
    w2 = 0.05 * jax.random.normal(k2, (E, D, I), dtype=jnp.float32)
    w3 = 0.05 * jax.random.normal(k3, (E, I, D), dtype=jnp.float32)

    out = conditional_feed_forward(x, expert_indices, w1, w2, w3)
    out = jax.block_until_ready(out)

    ref = jax.block_until_ready(reference(x, expert_indices, w1, w2, w3))
    assert out.shape == (T, A, D), out.shape
    # bf16 MXU operands with fp32 accumulation vs fp32 reference: normalized max error.
    err = float(jnp.max(jnp.abs(out - ref)) / (jnp.max(jnp.abs(ref)) + 1e-6))
    assert err < 3e-2, err

    print("KERNEL_OK")
</pallas_src>

<mosaic_0001>
module attributes {stable_mosaic.version = 11 : i64} {
  func.func @_cff_kernel(%arg0: i32, %arg1: i32, %arg2: memref<5xi32, #tpu.memory_space<smem>>, %arg3: memref<5xi32, #tpu.memory_space<smem>>, %arg4: memref<256x32xbf16, #tpu.memory_space<vmem>>, %arg5: memref<1x64x32xbf16, #tpu.memory_space<vmem>>, %arg6: memref<1x64x32xbf16, #tpu.memory_space<vmem>>, %arg7: memref<1x32x64xbf16, #tpu.memory_space<vmem>>, %arg8: memref<256x32xf32, #tpu.memory_space<vmem>>, %arg9: memref<256x32xf32, #tpu.memory_space<vmem>>) attributes {dimension_semantics = [#tpu.dimension_semantics<parallel>, #tpu.dimension_semantics<arbitrary>], iteration_bounds = array<i64: 5, 1>, scalar_prefetch = 2 : i64, scratch_operands = 1 : i64, tpu.core_type = #tpu.core_type<tc>, window_params = [{transform_indices = @transform_0, window_bounds = array<i64: 256, 32>}, {transform_indices = @transform_1, window_bounds = array<i64: 1, 64, 32>}, {transform_indices = @transform_2, window_bounds = array<i64: 1, 64, 32>}, {transform_indices = @transform_3, window_bounds = array<i64: 1, 32, 64>}, {transform_indices = @transform_4, window_bounds = array<i64: 256, 32>}]} {
    %0 = arith.index_cast %arg0 : i32 to index
    %1 = memref.load %arg3[%0] : memref<5xi32, #tpu.memory_space<smem>>
    %c1_i32 = arith.constant 1 : i32
    %2 = arith.cmpi eq, %1, %c1_i32 : i32
    %3 = arith.extui %2 : i1 to i32
    %c0_i32 = arith.constant 0 : i32
    %4 = arith.cmpi ne, %3, %c0_i32 : i32
    scf.if %4 {
      %c0_i32_0 = arith.constant 0 : i32
      %5 = arith.cmpi eq, %arg1, %c0_i32_0 : i32
      %6 = arith.extui %5 : i1 to i32
      %c0_i32_1 = arith.constant 0 : i32
      %7 = arith.cmpi ne, %6, %c0_i32_1 : i32
      scf.if %7 {
        %cst_21 = arith.constant 0.000000e+00 : f32
        %32 = vector.broadcast %cst_21 : f32 to vector<256x32xf32>
        %c0_22 = arith.constant 0 : index
        %c0_23 = arith.constant 0 : index
        %33 = vector.load %arg9[%c0_22, %c0_23] : memref<256x32xf32, #tpu.memory_space<vmem>>, vector<256x32xf32>
        tpu.vector_store %arg9[%c0_22, %c0_23], %32 {strides = array<i32>} : memref<256x32xf32, #tpu.memory_space<vmem>>, vector<256x32xf32>,
      } else {
      }
      %c0 = arith.constant 0 : index
      %c0_2 = arith.constant 0 : index
      %8 = vector.load %arg4[%c0, %c0_2] : memref<256x32xbf16, #tpu.memory_space<vmem>>, vector<256x32xbf16>
      %c0_3 = arith.constant 0 : index
      %c0_4 = arith.constant 0 : index
      %c0_5 = arith.constant 0 : index
      %9 = vector.load %arg5[%c0_3, %c0_4, %c0_5] : memref<1x64x32xbf16, #tpu.memory_space<vmem>>, vector<1x64x32xbf16>
      %10 = vector.shape_cast %9 : vector<1x64x32xbf16> to vector<64x32xbf16>
      %c0_6 = arith.constant 0 : index
      %c0_7 = arith.constant 0 : index
      %c0_8 = arith.constant 0 : index
      %11 = vector.load %arg6[%c0_6, %c0_7, %c0_8] : memref<1x64x32xbf16, #tpu.memory_space<vmem>>, vector<1x64x32xbf16>
      %12 = vector.shape_cast %11 : vector<1x64x32xbf16> to vector<64x32xbf16>
      %c0_9 = arith.constant 0 : index
      %c0_10 = arith.constant 0 : index
      %c0_11 = arith.constant 0 : index
      %13 = vector.load %arg7[%c0_9, %c0_10, %c0_11] : memref<1x32x64xbf16, #tpu.memory_space<vmem>>, vector<1x32x64xbf16>
      %14 = vector.shape_cast %13 : vector<1x32x64xbf16> to vector<32x64xbf16>
      %cst = arith.constant dense<0.000000e+00> : vector<256x64xf32>
      %15 = tpu.matmul %8, %10, %cst {dimension_numbers = #tpu.dot_dimension_numbers<[1], [1], [0], [0], [0, 0, 1, 0], [], []>} : vector<256x32xbf16>, vector<64x32xbf16>, vector<256x64xf32> -> vector<256x64xf32>
      %cst_12 = arith.constant dense<0.000000e+00> : vector<256x64xf32>
      %16 = tpu.matmul %8, %12, %cst_12 {dimension_numbers = #tpu.dot_dimension_numbers<[1], [1], [0], [0], [0, 0, 1, 0], [], []>} : vector<256x32xbf16>, vector<64x32xbf16>, vector<256x64xf32> -> vector<256x64xf32>
      %17 = arith.negf %15 : vector<256x64xf32>
      %18 = math.exp %17 : vector<256x64xf32>
      %cst_13 = arith.constant 1.000000e+00 : f32
      %19 = vector.broadcast %cst_13 : f32 to vector<256x64xf32>
      %20 = arith.addf %19, %18 : vector<256x64xf32>
      %21 = arith.divf %19, %20 : vector<256x64xf32>
      %22 = arith.mulf %15, %21 : vector<256x64xf32>
      %23 = arith.mulf %22, %16 : vector<256x64xf32>
      %c0_14 = arith.constant 0 : index
      %c0_15 = arith.constant 0 : index
      %24 = vector.load %arg9[%c0_14, %c0_15] : memref<256x32xf32, #tpu.memory_space<vmem>>, vector<256x32xf32>
      %25 = arith.truncf %23 : vector<256x64xf32> to vector<256x64xbf16>
      %cst_16 = arith.constant dense<0.000000e+00> : vector<256x32xf32>
      %26 = tpu.matmul %25, %14, %cst_16 {dimension_numbers = #tpu.dot_dimension_numbers<[1], [1], [0], [0], [0, 0, 1, 0], [], []>} : vector<256x64xbf16>, vector<32x64xbf16>, vector<256x32xf32> -> vector<256x32xf32>
      %27 = arith.addf %24, %26 : vector<256x32xf32>
      %c0_17 = arith.constant 0 : index
      %c0_18 = arith.constant 0 : index
      %28 = vector.load %arg9[%c0_17, %c0_18] : memref<256x32xf32, #tpu.memory_space<vmem>>, vector<256x32xf32>
      tpu.vector_store %arg9[%c0_17, %c0_18], %27 {strides = array<i32>} : memref<256x32xf32, #tpu.memory_space<vmem>>, vector<256x32xf32>,
      %c0_i32_19 = arith.constant 0 : i32
      %29 = arith.cmpi eq, %arg1, %c0_i32_19 : i32
      %30 = arith.extui %29 : i1 to i32
      %c0_i32_20 = arith.constant 0 : i32
      %31 = arith.cmpi ne, %30, %c0_i32_20 : i32
      scf.if %31 {
        %c0_21 = arith.constant 0 : index
        %c0_22 = arith.constant 0 : index
        %32 = vector.load %arg9[%c0_21, %c0_22] : memref<256x32xf32, #tpu.memory_space<vmem>>, vector<256x32xf32>
        %c0_23 = arith.constant 0 : index
        %c0_24 = arith.constant 0 : index
        %33 = vector.load %arg8[%c0_23, %c0_24] : memref<256x32xf32, #tpu.memory_space<vmem>>, vector<256x32xf32>
        tpu.vector_store %arg8[%c0_23, %c0_24], %32 {strides = array<i32>} : memref<256x32xf32, #tpu.memory_space<vmem>>, vector<256x32xf32>,
      } else {
      }
    } else {
    }
    return
  }
  func.func @transform_0(%arg0: i32, %arg1: i32, %arg2: memref<5xi32, #tpu.memory_space<smem>>, %arg3: memref<5xi32, #tpu.memory_space<smem>>) -> (i32, i32) {
    %c0_i32 = arith.constant 0 : i32
    %c0_i32_0 = arith.constant 0 : i32
    return %arg0, %c0_i32 : i32, i32
  }
  func.func @transform_1(%arg0: i32, %arg1: i32, %arg2: memref<5xi32, #tpu.memory_space<smem>>, %arg3: memref<5xi32, #tpu.memory_space<smem>>) -> (i32, i32, i32) {
    %0 = arith.index_cast %arg0 : i32 to index
    %1 = memref.load %arg3[%0] : memref<5xi32, #tpu.memory_space<smem>>
    %2 = arith.muli %1, %arg1 : i32
    %c1_i32 = arith.constant 1 : i32
    %3 = arith.subi %c1_i32, %1 : i32
    %c0_i32 = arith.constant 0 : i32
    %4 = arith.muli %3, %c0_i32 : i32
    %5 = arith.addi %2, %4 : i32
    %6 = arith.index_cast %arg0 : i32 to index
    %7 = memref.load %arg2[%6] : memref<5xi32, #tpu.memory_space<smem>>
    %c0_i32_0 = arith.constant 0 : i32
    %c0_i32_1 = arith.constant 0 : i32
    return %7, %5, %c0_i32_0 : i32, i32, i32
  }
  func.func @transform_2(%arg0: i32, %arg1: i32, %arg2: memref<5xi32, #tpu.memory_space<smem>>, %arg3: memref<5xi32, #tpu.memory_space<smem>>) -> (i32, i32, i32) {
    %0 = arith.index_cast %arg0 : i32 to index
    %1 = memref.load %arg3[%0] : memref<5xi32, #tpu.memory_space<smem>>
    %2 = arith.muli %1, %arg1 : i32
    %c1_i32 = arith.constant 1 : i32
    %3 = arith.subi %c1_i32, %1 : i32
    %c0_i32 = arith.constant 0 : i32
    %4 = arith.muli %3, %c0_i32 : i32
    %5 = arith.addi %2, %4 : i32
    %6 = arith.index_cast %arg0 : i32 to index
    %7 = memref.load %arg2[%6] : memref<5xi32, #tpu.memory_space<smem>>
    %c0_i32_0 = arith.constant 0 : i32
    %c0_i32_1 = arith.constant 0 : i32
    return %7, %5, %c0_i32_0 : i32, i32, i32
  }
  func.func @transform_3(%arg0: i32, %arg1: i32, %arg2: memref<5xi32, #tpu.memory_space<smem>>, %arg3: memref<5xi32, #tpu.memory_space<smem>>) -> (i32, i32, i32) {
    %0 = arith.index_cast %arg0 : i32 to index
    %1 = memref.load %arg3[%0] : memref<5xi32, #tpu.memory_space<smem>>
    %2 = arith.muli %1, %arg1 : i32
    %c1_i32 = arith.constant 1 : i32
    %3 = arith.subi %c1_i32, %1 : i32
    %c0_i32 = arith.constant 0 : i32
    %4 = arith.muli %3, %c0_i32 : i32
    %5 = arith.addi %2, %4 : i32
    %6 = arith.index_cast %arg0 : i32 to index
    %7 = memref.load %arg2[%6] : memref<5xi32, #tpu.memory_space<smem>>
    %c0_i32_0 = arith.constant 0 : i32
    %c0_i32_1 = arith.constant 0 : i32
    return %7, %c0_i32_0, %5 : i32, i32, i32
  }
  func.func @transform_4(%arg0: i32, %arg1: i32, %arg2: memref<5xi32, #tpu.memory_space<smem>>, %arg3: memref<5xi32, #tpu.memory_space<smem>>) -> (i32, i32) {
    %c0_i32 = arith.constant 0 : i32
    %c0_i32_0 = arith.constant 0 : i32
    return %arg0, %c0_i32 : i32, i32
  }
}

</mosaic_0001>

<llo_original>
// kernel: tpu_custom_call.1
$region0: #{tpu_custom_call.1}
  #allocation0 [shape = 'u32[]', space=smem, size = 0x4, offset = 0x4, fixed_abs, tag = 'smem constant byte address 0x4 - core index']
  #allocation1 [shape = 'u32[144,128]{1,0:T(1,128)}', space=vmem, size = 0x12000, scoped, tag = 'internal scratch']
  #allocation2 [shape = 'f32[256,32]{1,0:T(8,128)}', space=vmem, size = 0x20000, scoped, tag = 'scratch operand']
  #allocation3 [shape = 's32[1]{0}', space=sflag, size = 0x4, scoped, tag = 'scoped memory for tpu_custom_call.1']
  #allocation4 [shape = 'u8[512]{0}', space=smem, size = 0x200, scoped, tag = 'prefetched SMEM operand 0']
  #allocation5 [shape = 'u8[512]{0}', space=smem, size = 0x200, scoped, tag = 'prefetched SMEM operand 1']
  %s0 = inlined_call_operand.vmem [shape: s32[5], index: 0, kind: input, shape index: {}]
  %s1 = inlined_call_operand.vmem [shape: s32[5], index: 1, kind: input, shape index: {}]
  %s2 = inlined_call_operand.vmem [shape: bf16[1280,32], index: 2, kind: input, shape index: {}]
  %s3 = inlined_call_operand.vmem [shape: bf16[4,64,32], index: 3, kind: input, shape index: {}]
  %s4 = inlined_call_operand.vmem [shape: bf16[4,64,32], index: 4, kind: input, shape index: {}]
  %s5 = inlined_call_operand.vmem [shape: bf16[4,32,64], index: 5, kind: input, shape index: {}]
  %s6 = inlined_call_operand.vmem [shape: f32[1280,32], index: 6, kind: output, shape index: {}]
  %s7 = sld [smem:[#allocation0]]
  $region61: #{tpu_custom_call.1} parent=0
    _
  %s9 = ssub.s32 1, %s7
  %s10 = scalar_select 0, %s9, %s7
  %s11 = sshll.u32 %s0, 4
  %s12 = int_to_ptr.vmem [resolvable:$true] %s11
  %14 = dma.vmem_to_smem %s12, 16, [#allocation4], [#allocation3]
  %s15 = sshll.u32 %s1, 4
  %s16 = int_to_ptr.vmem [resolvable:$true] %s15
  %18 = dma.vmem_to_smem %s16, 16, [#allocation5], [#allocation3]
  %19 = dma.done [#allocation3], 32
  %20 = sfence
  loop: start=0, step=1, limit=7
  $region2: #{tpu_custom_call.1} parent=0 // loop_pre_header
    _
  $region3: #{tpu_custom_call.1} parent=0 // loop_header
    %s22 = sphi 0, %s26
    %p23 = scmp.ge.s32.totalorder %s22, 7
    %s29 = sphi 0, %s41
    %s30 = sphi 0, %s37
    %s31 = sphi 0, %s29
    %s32 = sphi 0, %s30
    %s33 = sphi 0, %s31
    %s34 = sphi 0, %s32
    %s44 = sphi 0, %s46
    %s47 = sphi 0, %s44
    %s48 = sphi 0, %s47
    %s64 = sphi 0, %s48
    %s78 = sphi 0, %s80
    %s81 = sphi 0, %s78
    %s82 = sphi 0, %s81
    %s98 = sphi 0, %s82
    %s112 = sphi 0, %s114
    %s115 = sphi 0, %s112
    %s116 = sphi 0, %s115
    %s132 = sphi 0, %s116
    %s146 = sphi 0, %s148
    %s149 = sphi 0, %s146
    %s150 = sphi 0, %s149
    %s166 = sphi 0, %s150
    %s172 = sphi 0, %s174
    %s175 = sphi 0, %s172
    %s176 = sphi 0, %s175
    %s192 = sphi 0, %s176
  $region4: #{tpu_custom_call.1} parent=0 // loop_header_branch
    %25 = sbr.rel (%p23) target = $region8
  $region5: #{tpu_custom_call.1} parent=0 // loop_body
    %s27 = ssub.s32 %s22, 1
    %s28 = ssub.s32 %s22, 2
    %s35 = sadd.s32 1, %s30
    %p36 = scmp.ge.s32.totalorder %s35, 1
    %s37 = scalar_select %p36, 0, %s35
    %s38 = sadd.s32 1, %s29
    %s39 = scalar_select %p36, %s38, %s29
    %p40 = scmp.ge.s32.totalorder %s39, 5
    %s41 = scalar_select %p40, 0, %s39
    %s42 = ssub.s32 %s29, %s41
    %p43 = scmp.eq.s32.totalorder %s42, 0
    %s45 = sadd.s32 %s44, 1
    %s46 = scalar_select %p43, %s44, %s45
    %p49 = pneg %p43
    %p50 = scmp.eq.s32.totalorder %s22, 4
    %p51 = por %p49, %p50
    %p52 = scmp.ne.s32.totalorder %s44, %s47
    %p53 = scmp.eq.s32.totalorder %s22, 0
    %p54 = por %p52, %p53
    %p55 = scmp.ne.s32.totalorder %s44, %s47
    %p56 = scmp.eq.s32.totalorder %s27, 4
    %p57 = por %p55, %p56
    %p58 = scmp.ne.s32.totalorder %s47, %s48
    %p59 = scmp.eq.s32.totalorder %s27, 0
    %p60 = por %p58, %p59
    %p61 = scmp.ne.s32.totalorder %s47, %s48
    %p62 = scmp.eq.s32.totalorder %s28, 4
    %p63 = por %p61, %p62
    %p65 = scmp.ne.s32.totalorder %s48, %s64
    %p66 = scmp.eq.s32.totalorder %s28, 0
    %p67 = por %p65, %p66
    %s68 = sld [smem:[#allocation5 + %s29]]
    %s69 = smul.u32 %s68, %s30
    %s70 = sld [smem:[#allocation4 + %s29]]
    %s71 = sld [smem:[#allocation5 + %s41]]
    %s72 = smul.u32 %s71, %s37
    %s73 = sld [smem:[#allocation4 + %s41]]
    %s74 = ssub.s32 %s70, %s73
    %s75 = ssub.s32 %s69, %s72
    %s76 = sor.u32 %s74, %s75
    %p77 = scmp.eq.s32.totalorder %s76, 0
    %s79 = sadd.s32 %s78, 1
    %s80 = scalar_select %p77, %s78, %s79
    %p83 = pneg %p77
    %p84 = scmp.eq.s32.totalorder %s22, 4
    %p85 = por %p83, %p84
    %p86 = scmp.ne.s32.totalorder %s78, %s81
    %p87 = scmp.eq.s32.totalorder %s22, 0
    %p88 = por %p86, %p87
    %p89 = scmp.ne.s32.totalorder %s78, %s81
    %p90 = scmp.eq.s32.totalorder %s27, 4
    %p91 = por %p89, %p90
    %p92 = scmp.ne.s32.totalorder %s81, %s82
    %p93 = scmp.eq.s32.totalorder %s27, 0
    %p94 = por %p92, %p93
    %p95 = scmp.ne.s32.totalorder %s81, %s82
    %p96 = scmp.eq.s32.totalorder %s28, 4
    %p97 = por %p95, %p96
    %p99 = scmp.ne.s32.totalorder %s82, %s98
    %p100 = scmp.eq.s32.totalorder %s28, 0
    %p101 = por %p99, %p100
    %s102 = sld [smem:[#allocation5 + %s29]]
    %s103 = smul.u32 %s102, %s30
    %s104 = sld [smem:[#allocation4 + %s29]]
    %s105 = sld [smem:[#allocation5 + %s41]]
    %s106 = smul.u32 %s105, %s37
    %s107 = sld [smem:[#allocation4 + %s41]]
    %s108 = ssub.s32 %s104, %s107
    %s109 = ssub.s32 %s103, %s106
    %s110 = sor.u32 %s108, %s109
    %p111 = scmp.eq.s32.totalorder %s110, 0
    %s113 = sadd.s32 %s112, 1
    %s114 = scalar_select %p111, %s112, %s113
    %p117 = pneg %p111
    %p118 = scmp.eq.s32.totalorder %s22, 4
    %p119 = por %p117, %p118
    %p120 = scmp.ne.s32.totalorder %s112, %s115
    %p121 = scmp.eq.s32.totalorder %s22, 0
    %p122 = por %p120, %p121
    %p123 = scmp.ne.s32.totalorder %s112, %s115
    %p124 = scmp.eq.s32.totalorder %s27, 4
    %p125 = por %p123, %p124
    %p126 = scmp.ne.s32.totalorder %s115, %s116
    %p127 = scmp.eq.s32.totalorder %s27, 0
    %p128 = por %p126, %p127
    %p129 = scmp.ne.s32.totalorder %s115, %s116
    %p130 = scmp.eq.s32.totalorder %s28, 4
    %p131 = por %p129, %p130
    %p133 = scmp.ne.s32.totalorder %s116, %s132
    %p134 = scmp.eq.s32.totalorder %s28, 0
    %p135 = por %p133, %p134
    %s136 = sld [smem:[#allocation5 + %s29]]
    %s137 = smul.u32 %s136, %s30
    %s138 = sld [smem:[#allocation4 + %s29]]
    %s139 = sld [smem:[#allocation5 + %s41]]
    %s140 = smul.u32 %s139, %s37
    %s141 = sld [smem:[#allocation4 + %s41]]
    %s142 = ssub.s32 %s138, %s141
    %s143 = ssub.s32 %s137, %s140
    %s144 = sor.u32 %s142, %s143
    %p145 = scmp.eq.s32.totalorder %s144, 0
    %s147 = sadd.s32 %s146, 1
    %s148 = scalar_select %p145, %s146, %s147
    %p151 = pneg %p145
    %p152 = scmp.eq.s32.totalorder %s22, 4
    %p153 = por %p151, %p152
    %p154 = scmp.ne.s32.totalorder %s146, %s149
    %p155 = scmp.eq.s32.totalorder %s22, 0
    %p156 = por %p154, %p155
    %p157 = scmp.ne.s32.totalorder %s146, %s149
    %p158 = scmp.eq.s32.totalorder %s27, 4
    %p159 = por %p157, %p158
    %p160 = scmp.ne.s32.totalorder %s149, %s150
    %p161 = scmp.eq.s32.totalorder %s27, 0
    %p162 = por %p160, %p161
    %p163 = scmp.ne.s32.totalorder %s149, %s150
    %p164 = scmp.eq.s32.totalorder %s28, 4
    %p165 = por %p163, %p164
    %p167 = scmp.ne.s32.totalorder %s150, %s166
    %p168 = scmp.eq.s32.totalorder %s28, 0
    %p169 = por %p167, %p168
    %s170 = ssub.s32 %s29, %s41
    %p171 = scmp.eq.s32.totalorder %s170, 0
    %s173 = sadd.s32 %s172, 1
    %s174 = scalar_select %p171, %s172, %s173
    %p177 = pneg %p171
    %p178 = scmp.eq.s32.totalorder %s22, 4
    %p179 = por %p177, %p178
    %p180 = scmp.ne.s32.totalorder %s172, %s175
    %p181 = scmp.eq.s32.totalorder %s22, 0
    %p182 = por %p180, %p181
    %p183 = scmp.ne.s32.totalorder %s172, %s175
    %p184 = scmp.eq.s32.totalorder %s27, 4
    %p185 = por %p183, %p184
    %p186 = scmp.ne.s32.totalorder %s175, %s176
    %p187 = scmp.eq.s32.totalorder %s27, 0
    %p188 = por %p186, %p187
    %p189 = scmp.ne.s32.totalorder %s175, %s176
    %p190 = scmp.eq.s32.totalorder %s28, 4
    %p191 = por %p189, %p190
    %p193 = scmp.ne.s32.totalorder %s176, %s192
    %p194 = scmp.eq.s32.totalorder %s28, 0
    %p195 = por %p193, %p194
    %p196 = scmp.le.s32.totalorder 1, %s22
    %p197 = scmp.lt.s32.totalorder %s22, 6
    %p198 = pnand %p196, %p197
    %p199 = pneg %p198
    // Predicated region
    $region9: #{tpu_custom_call.1} parent=5 // pred_check
      _
    $region10: #{tpu_custom_call.1} parent=5 // pred_check_branch
      %201 = sbr.rel (%p198) target = $region12
    $region11: #{tpu_custom_call.1} parent=5 // pred_region
      %s202 = ssub.s32 %s22, 1
    $region12: #{tpu_custom_call.1} parent=5 // pred_fallthru
      _
    %p203 = scmp.lt.s32.totalorder %s22, 5
    // Predicated region
    $region13: #{tpu_custom_call.1} parent=5 // pred_check
      %p204 = pneg %p203
    $region14: #{tpu_custom_call.1} parent=5 // pred_check_branch
      %206 = sbr.rel (%p204) target = $region16
    $region15: #{tpu_custom_call.1} parent=5 // pred_region
      // Predicated region
      $region17: #{tpu_custom_call.1} parent=15 // pred_check
        %p207 = pneg %p54
      $region18: #{tpu_custom_call.1} parent=15 // pred_check_branch
        %209 = sbr.rel (%p207) target = $region20
      $region19: #{tpu_custom_call.1} parent=15 // pred_region
        %s210 = smul.u32 32, %s29
        %p211 = scmp.lt.s32.totalorder %s210, 159
        %s212 = scalar_select %p211, %s210, 159
        %s213 = smul.addr %s212, 4
        %s214 = scalar_lea.vmem %s2, %s213
        %s215 = smul.u32 32, %s29
      $region20: #{tpu_custom_call.1} parent=15 // pred_fallthru
        _
      // Predicated region
      $region21: #{tpu_custom_call.1} parent=15 // pred_check
        %p216 = pneg %p88
      $region22: #{tpu_custom_call.1} parent=15 // pred_check_branch
        %218 = sbr.rel (%p216) target = $region24
      $region23: #{tpu_custom_call.1} parent=15 // pred_region
        %s219 = sld [smem:[#allocation5 + %s29]]
        %s220 = smul.u32 %s219, %s30
        %s221 = sld [smem:[#allocation4 + %s29]]
        %s222 = smul.u32 8, %s220
        %p223 = scmp.lt.s32.totalorder %s221, 3
        %s224 = scalar_select %p223, %s221, 3
        %p225 = scmp.lt.s32.totalorder %s222, 7
        %s226 = scalar_select %p225, %s222, 7
        %s227 = smul.addr %s224, 8
        %s228 = sadd.s32 %s226, %s227
        %s229 = smul.addr %s228, 4
        %s230 = scalar_lea.vmem %s3, %s229
        %s231 = sld [smem:[#allocation5 + %s29]]
        %s232 = smul.u32 %s231, %s30
        %s233 = sld [smem:[#allocation4 + %s29]]
        %s234 = smul.u32 8, %s232
      $region24: #{tpu_custom_call.1} parent=15 // pred_fallthru
        _
      // Predicated region
      $region25: #{tpu_custom_call.1} parent=15 // pred_check
        %p235 = pneg %p122
      $region26: #{tpu_custom_call.1} parent=15 // pred_check_branch
        %237 = sbr.rel (%p235) target = $region28
      $region27: #{tpu_custom_call.1} parent=15 // pred_region
        %s238 = sld [smem:[#allocation5 + %s29]]
        %s239 = smul.u32 %s238, %s30
        %s240 = sld [smem:[#allocation4 + %s29]]
        %s241 = smul.u32 8, %s239
        %p242 = scmp.lt.s32.totalorder %s240, 3
        %s243 = scalar_select %p242, %s240, 3
        %p244 = scmp.lt.s32.totalorder %s241, 7
        %s245 = scalar_select %p244, %s241, 7
        %s246 = smul.addr %s243, 8
        %s247 = sadd.s32 %s245, %s246
        %s248 = smul.addr %s247, 4
        %s249 = scalar_lea.vmem %s4, %s248
        %s250 = sld [smem:[#allocation5 + %s29]]
        %s251 = smul.u32 %s250, %s30
        %s252 = sld [smem:[#allocation4 + %s29]]
        %s253 = smul.u32 8, %s251
      $region28: #{tpu_custom_call.1} parent=15 // pred_fallthru
        _
      // Predicated region
      $region29: #{tpu_custom_call.1} parent=15 // pred_check
        %p254 = pneg %p156
      $region30: #{tpu_custom_call.1} parent=15 // pred_check_branch
        %256 = sbr.rel (%p254) target = $region32
      $region31: #{tpu_custom_call.1} parent=15 // pred_region
        %s257 = sld [smem:[#allocation5 + %s29]]
        %s258 = smul.u32 %s257, %s30
        %s259 = sld [smem:[#allocation4 + %s29]]
        %p260 = scmp.lt.s32.totalorder %s259, 3
        %s261 = scalar_select %p260, %s259, 3
        %p262 = scmp.lt.s32.totalorder %s258, 0
        %s263 = scalar_select %p262, %s258, 0
        %s264 = smul.addr %s261, 4
        %s265 = sadd.s32 %s263, %s264
        %s266 = smul.addr %s265, 4
        %s267 = scalar_lea.vmem %s5, %s266
        %s268 = sld [smem:[#allocation5 + %s29]]
        %s269 = smul.u32 %s268, %s30
        %s270 = sld [smem:[#allocation4 + %s29]]
      $region32: #{tpu_custom_call.1} parent=15 // pred_fallthru
        _
    $region16: #{tpu_custom_call.1} parent=5 // pred_fallthru
      _
    %p271 = scmp.le.s32.totalorder 1, %s22
    %p272 = scmp.lt.s32.totalorder %s22, 6
    %p273 = pnand %p271, %p272
    %p274 = pneg %p273
    // Predicated region
    $region33: #{tpu_custom_call.1} parent=5 // pred_check
      _
    $region34: #{tpu_custom_call.1} parent=5 // pred_check_branch
      %276 = sbr.rel (%p273) target = $region36
    $region35: #{tpu_custom_call.1} parent=5 // pred_region
      %s277 = ssub.s32 %s22, 1
      %s278 = smul.u32 32, %s31
      %p279 = scmp.lt.s32.totalorder %s278, 159
      %s280 = scalar_select %p279, %s278, 159
      %s281 = smul.addr %s280, 4
      %s282 = scalar_lea.vmem %s2, %s281
      %p283 = pneg %p60
      %p284 = pneg %p57
      %s285 = sld [smem:[#allocation5 + %s31]]
      %s286 = smul.u32 %s285, %s32
      %s287 = sld [smem:[#allocation4 + %s31]]
      %s288 = smul.u32 8, %s286
      %p289 = scmp.lt.s32.totalorder %s287, 3
      %s290 = scalar_select %p289, %s287, 3
      %p291 = scmp.lt.s32.totalorder %s288, 7
      %s292 = scalar_select %p291, %s288, 7
      %s293 = smul.addr %s290, 8
      %s294 = sadd.s32 %s292, %s293
      %s295 = smul.addr %s294, 4
      %s296 = scalar_lea.vmem %s3, %s295
      %p297 = pneg %p94
      %p298 = pneg %p91
      %s299 = sld [smem:[#allocation5 + %s31]]
      %s300 = smul.u32 %s299, %s32
      %s301 = sld [smem:[#allocation4 + %s31]]
      %s302 = smul.u32 8, %s300
      %p303 = scmp.lt.s32.totalorder %s301, 3
      %s304 = scalar_select %p303, %s301, 3
      %p305 = scmp.lt.s32.totalorder %s302, 7
      %s306 = scalar_select %p305, %s302, 7
      %s307 = smul.addr %s304, 8
      %s308 = sadd.s32 %s306, %s307
      %s309 = smul.addr %s308, 4
      %s310 = scalar_lea.vmem %s4, %s309
      %p311 = pneg %p128
      %p312 = pneg %p125
      %s313 = sld [smem:[#allocation5 + %s31]]
      %s314 = smul.u32 %s313, %s32
      %s315 = sld [smem:[#allocation4 + %s31]]
      %p316 = scmp.lt.s32.totalorder %s315, 3
      %s317 = scalar_select %p316, %s315, 3
      %p318 = scmp.lt.s32.totalorder %s314, 0
      %s319 = scalar_select %p318, %s314, 0
      %s320 = smul.addr %s317, 4
      %s321 = sadd.s32 %s319, %s320
      %s322 = smul.addr %s321, 4
      %s323 = scalar_lea.vmem %s5, %s322
      %p324 = pneg %p162
      %p325 = pneg %p159
      %p326 = pneg %p188
      %p327 = pneg %p185
      %s328 = smul.u32 32, %s31
      %p329 = scmp.lt.s32.totalorder %s328, 159
      %s330 = scalar_select %p329, %s328, 159
      %s331 = smul.addr %s330, 8
      %s332 = scalar_lea.vmem %s6, %s331
      %s333 = smul.u32 32, %s31
      %p334 = scmp.lt.s32.totalorder %s333, 159
      %s335 = scalar_select %p334, %s333, 159
      %s336 = smul.addr %s335, 4
      %s337 = scalar_lea.vmem %s2, %s336
      %s338 = smul.u32 32, %s31
      %s339 = sld [smem:[#allocation5 + %s31]]
      %s340 = smul.u32 %s339, %s32
      %s341 = sld [smem:[#allocation4 + %s31]]
      %s342 = smul.u32 8, %s340
      %p343 = scmp.lt.s32.totalorder %s341, 3
      %s344 = scalar_select %p343, %s341, 3
      %p345 = scmp.lt.s32.totalorder %s342, 7
      %s346 = scalar_select %p345, %s342, 7
      %s347 = smul.addr %s344, 8
      %s348 = sadd.s32 %s346, %s347
      %s349 = smul.addr %s348, 4
      %s350 = scalar_lea.vmem %s3, %s349
      %s351 = sld [smem:[#allocation5 + %s31]]
      %s352 = smul.u32 %s351, %s32
      %s353 = sld [smem:[#allocation4 + %s31]]
      %s354 = smul.u32 8, %s352
      %s355 = sld [smem:[#allocation5 + %s31]]
      %s356 = smul.u32 %s355, %s32
      %s357 = sld [smem:[#allocation4 + %s31]]
      %s358 = smul.u32 8, %s356
      %p359 = scmp.lt.s32.totalorder %s357, 3
      %s360 = scalar_select %p359, %s357, 3
      %p361 = scmp.lt.s32.totalorder %s358, 7
      %s362 = scalar_select %p361, %s358, 7
      %s363 = smul.addr %s360, 8
      %s364 = sadd.s32 %s362, %s363
      %s365 = smul.addr %s364, 4
      %s366 = scalar_lea.vmem %s4, %s365
      %s367 = sld [smem:[#allocation5 + %s31]]
      %s368 = smul.u32 %s367, %s32
      %s369 = sld [smem:[#allocation4 + %s31]]
      %s370 = smul.u32 8, %s368
      %s371 = sld [smem:[#allocation5 + %s31]]
      %s372 = smul.u32 %s371, %s32
      %s373 = sld [smem:[#allocation4 + %s31]]
      %p374 = scmp.lt.s32.totalorder %s373, 3
      %s375 = scalar_select %p374, %s373, 3
      %p376 = scmp.lt.s32.totalorder %s372, 0
      %s377 = scalar_select %p376, %s372, 0
      %s378 = smul.addr %s375, 4
      %s379 = sadd.s32 %s377, %s378
      %s380 = smul.addr %s379, 4
      %s381 = scalar_lea.vmem %s5, %s380
      %s382 = sld [smem:[#allocation5 + %s31]]
      %s383 = smul.u32 %s382, %s32
      %s384 = sld [smem:[#allocation4 + %s31]]
      %s385 = smul.u32 32, %s31
      %p386 = scmp.lt.s32.totalorder %s385, 159
      %s387 = scalar_select %p386, %s385, 159
      %s388 = smul.addr %s387, 8
      %s389 = scalar_lea.vmem %s6, %s388
      %s390 = smul.u32 32, %s31
      %s392 = sld [smem:[#allocation5 + %s31]]
      %p393 = scmp.eq.s32.totalorder %s392, 1
      // Predicated region
      $region37: #{tpu_custom_call.1} parent=35 // pred_check
        %p394 = pneg %p393
      $region38: #{tpu_custom_call.1} parent=35 // pred_check_branch
        %396 = sbr.rel (%p394) target = $region40
      $region39: #{tpu_custom_call.1} parent=35 // pred_region
        %p397 = scmp.eq.s32.totalorder %s32, 0
        // Predicated region
        $region41: #{tpu_custom_call.1} parent=39 // pred_check
          %p398 = pneg %p397
        $region42: #{tpu_custom_call.1} parent=39 // pred_check_branch
          %400 = sbr.rel (%p398) target = $region44
        $region43: #{tpu_custom_call.1} parent=39 // pred_region
          %vm401 = vcmask 261120
          %402 = vst.msk [vmem:[#allocation2] sm:$0xff] %vm401, 0.0
          %403 = vst.msk [vmem:[#allocation2 + $0x8] sm:$0xff] %vm401, 0.0
          %404 = vst.msk [vmem:[#allocation2 + $0x10] sm:$0xff] %vm401, 0.0
          %405 = vst.msk [vmem:[#allocation2 + $0x18] sm:$0xff] %vm401, 0.0
          %406 = vst.msk [vmem:[#allocation2 + $0x20] sm:$0xff] %vm401, 0.0
          %407 = vst.msk [vmem:[#allocation2 + $0x28] sm:$0xff] %vm401, 0.0
          %408 = vst.msk [vmem:[#allocation2 + $0x30] sm:$0xff] %vm401, 0.0
          %409 = vst.msk [vmem:[#allocation2 + $0x38] sm:$0xff] %vm401, 0.0
          %410 = vst.msk [vmem:[#allocation2 + $0x40] sm:$0xff] %vm401, 0.0
          %411 = vst.msk [vmem:[#allocation2 + $0x48] sm:$0xff] %vm401, 0.0
          %412 = vst.msk [vmem:[#allocation2 + $0x50] sm:$0xff] %vm401, 0.0
          %413 = vst.msk [vmem:[#allocation2 + $0x58] sm:$0xff] %vm401, 0.0
          %414 = vst.msk [vmem:[#allocation2 + $0x60] sm:$0xff] %vm401, 0.0
          %415 = vst.msk [vmem:[#allocation2 + $0x68] sm:$0xff] %vm401, 0.0
          %416 = vst.msk [vmem:[#allocation2 + $0x70] sm:$0xff] %vm401, 0.0
          %417 = vst.msk [vmem:[#allocation2 + $0x78] sm:$0xff] %vm401, 0.0
          %418 = vst.msk [vmem:[#allocation2 + $0x80] sm:$0xff] %vm401, 0.0
          %419 = vst.msk [vmem:[#allocation2 + $0x88] sm:$0xff] %vm401, 0.0
          %420 = vst.msk [vmem:[#allocation2 + $0x90] sm:$0xff] %vm401, 0.0
          %421 = vst.msk [vmem:[#allocation2 + $0x98] sm:$0xff] %vm401, 0.0
          %422 = vst.msk [vmem:[#allocation2 + $0xa0] sm:$0xff] %vm401, 0.0
          %423 = vst.msk [vmem:[#allocation2 + $0xa8] sm:$0xff] %vm401, 0.0
          %424 = vst.msk [vmem:[#allocation2 + $0xb0] sm:$0xff] %vm401, 0.0
          %425 = vst.msk [vmem:[#allocation2 + $0xb8] sm:$0xff] %vm401, 0.0
          %426 = vst.msk [vmem:[#allocation2 + $0xc0] sm:$0xff] %vm401, 0.0
          %427 = vst.msk [vmem:[#allocation2 + $0xc8] sm:$0xff] %vm401, 0.0
          %428 = vst.msk [vmem:[#allocation2 + $0xd0] sm:$0xff] %vm401, 0.0
          %429 = vst.msk [vmem:[#allocation2 + $0xd8] sm:$0xff] %vm401, 0.0
          %430 = vst.msk [vmem:[#allocation2 + $0xe0] sm:$0xff] %vm401, 0.0
          %431 = vst.msk [vmem:[#allocation2 + $0xe8] sm:$0xff] %vm401, 0.0
          %432 = vst.msk [vmem:[#allocation2 + $0xf0] sm:$0xff] %vm401, 0.0
          %433 = vst.msk [vmem:[#allocation2 + $0xf8] sm:$0xff] %vm401, 0.0
        $region44: #{tpu_custom_call.1} parent=39 // pred_fallthru
          _
        %v434 = vld [vmem:[%s337] sm:$0xf]
        %v435 = vld [vmem:[%s337 + $0x4] sm:$0xf]
        %v436 = vld [vmem:[%s337 + $0x8] sm:$0xf]
        %v437 = vld [vmem:[%s337 + $0xc] sm:$0xf]
        %v438 = vld [vmem:[%s337 + $0x10] sm:$0xf]
        %v439 = vld [vmem:[%s337 + $0x14] sm:$0xf]
        %v440 = vld [vmem:[%s337 + $0x18] sm:$0xf]
        %v441 = vld [vmem:[%s337 + $0x1c] sm:$0xf]
        %v442 = vld [vmem:[%s337 + $0x20] sm:$0xf]
        %v443 = vld [vmem:[%s337 + $0x24] sm:$0xf]
        %v444 = vld [vmem:[%s337 + $0x28] sm:$0xf]
        %v445 = vld [vmem:[%s337 + $0x2c] sm:$0xf]
        %v446 = vld [vmem:[%s337 + $0x30] sm:$0xf]
        %v447 = vld [vmem:[%s337 + $0x34] sm:$0xf]
        %v448 = vld [vmem:[%s337 + $0x38] sm:$0xf]
        %v449 = vld [vmem:[%s337 + $0x3c] sm:$0xf]
        %v450 = vld [vmem:[%s337 + $0x40] sm:$0xf]
        %v451 = vld [vmem:[%s337 + $0x44] sm:$0xf]
        %v452 = vld [vmem:[%s337 + $0x48] sm:$0xf]
        %v453 = vld [vmem:[%s337 + $0x4c] sm:$0xf]
        %v454 = vld [vmem:[%s337 + $0x50] sm:$0xf]
        %v455 = vld [vmem:[%s337 + $0x54] sm:$0xf]
        %v456 = vld [vmem:[%s337 + $0x58] sm:$0xf]
        %v457 = vld [vmem:[%s337 + $0x5c] sm:$0xf]
        %v458 = vld [vmem:[%s337 + $0x60] sm:$0xf]
        %v459 = vld [vmem:[%s337 + $0x64] sm:$0xf]
        %v460 = vld [vmem:[%s337 + $0x68] sm:$0xf]
        %v461 = vld [vmem:[%s337 + $0x6c] sm:$0xf]
        %v462 = vld [vmem:[%s337 + $0x70] sm:$0xf]
        %v463 = vld [vmem:[%s337 + $0x74] sm:$0xf]
        %v464 = vld [vmem:[%s337 + $0x78] sm:$0xf]
        %v465 = vld [vmem:[%s337 + $0x7c] sm:$0xf]
        %v466 = vld [vmem:[%s350] sm:$0xf]
        %v467 = vld [vmem:[%s350 + $0x4] sm:$0xf]
        %v468 = vld [vmem:[%s350 + $0x8] sm:$0xf]
        %v469 = vld [vmem:[%s350 + $0xc] sm:$0xf]
        %v470 = vld [vmem:[%s350 + $0x10] sm:$0xf]
        %v471 = vld [vmem:[%s350 + $0x14] sm:$0xf]
        %v472 = vld [vmem:[%s350 + $0x18] sm:$0xf]
        %v473 = vld [vmem:[%s350 + $0x1c] sm:$0xf]
        %v474 = vld [vmem:[%s366] sm:$0xf]
        %v475 = vld [vmem:[%s366 + $0x4] sm:$0xf]
        %v476 = vld [vmem:[%s366 + $0x8] sm:$0xf]
        %v477 = vld [vmem:[%s366 + $0xc] sm:$0xf]
        %v478 = vld [vmem:[%s366 + $0x10] sm:$0xf]
        %v479 = vld [vmem:[%s366 + $0x14] sm:$0xf]
        %v480 = vld [vmem:[%s366 + $0x18] sm:$0xf]
        %v481 = vld [vmem:[%s366 + $0x1c] sm:$0xf]
        %v482 = vld [vmem:[%s381] sm:$0xf]
        %v483 = vld [vmem:[%s381 + $0x4] sm:$0xf]
        %v484 = vld [vmem:[%s381 + $0x8] sm:$0xf]
        %v485 = vld [vmem:[%s381 + $0xc] sm:$0xf]
        %v518 = vunpack.c.l.b16 %v434
        %v519 = vunpack.c.l.b16 %v435
        %v520 = vunpack.c.l.b16 %v436
        %v521 = vunpack.c.l.b16 %v437
        %v522 = vunpack.c.l.b16 %v438
        %v523 = vunpack.c.l.b16 %v439
        %v524 = vunpack.c.l.b16 %v440
        %v525 = vunpack.c.l.b16 %v441
        %v526 = vunpack.c.l.b16 %v442
        %v527 = vunpack.c.l.b16 %v443
        %v528 = vunpack.c.l.b16 %v444
        %v529 = vunpack.c.l.b16 %v445
        %v530 = vunpack.c.l.b16 %v446
        %v531 = vunpack.c.l.b16 %v447
        %v532 = vunpack.c.l.b16 %v448
        %v533 = vunpack.c.l.b16 %v449
        %v534 = vunpack.c.l.b16 %v450
        %v535 = vunpack.c.l.b16 %v451
        %v536 = vunpack.c.l.b16 %v452
        %v537 = vunpack.c.l.b16 %v453
        %v538 = vunpack.c.l.b16 %v454
        %v539 = vunpack.c.l.b16 %v455
        %v540 = vunpack.c.l.b16 %v456
        %v541 = vunpack.c.l.b16 %v457
        %v542 = vunpack.c.l.b16 %v458
        %v543 = vunpack.c.l.b16 %v459
        %v544 = vunpack.c.l.b16 %v460
        %v545 = vunpack.c.l.b16 %v461
        %v546 = vunpack.c.l.b16 %v462
        %v547 = vunpack.c.l.b16 %v463
        %v548 = vunpack.c.l.b16 %v464
        %v549 = vunpack.c.l.b16 %v465
        %v550 = vpack.c.b16 %v519, %v518
        %v551 = vpack.c.b16 %v521, %v520
        %v552 = vpack.c.b16 %v523, %v522
        %v553 = vpack.c.b16 %v525, %v524
        %v554 = vpack.c.b16 %v527, %v526
        %v555 = vpack.c.b16 %v529, %v528
        %v556 = vpack.c.b16 %v531, %v530
        %v557 = vpack.c.b16 %v533, %v532
        %v558 = vpack.c.b16 %v535, %v534
        %v559 = vpack.c.b16 %v537, %v536
        %v560 = vpack.c.b16 %v539, %v538
        %v561 = vpack.c.b16 %v541, %v540
        %v562 = vpack.c.b16 %v543, %v542
        %v563 = vpack.c.b16 %v545, %v544
        %v564 = vpack.c.b16 %v547, %v546
        %v565 = vpack.c.b16 %v549, %v548
        %v574 = vunpack.c.l.b16 %v466
        %v575 = vunpack.c.l.b16 %v467
        %v576 = vunpack.c.l.b16 %v468
        %v577 = vunpack.c.l.b16 %v469
        %v578 = vunpack.c.l.b16 %v470
        %v579 = vunpack.c.l.b16 %v471
        %v580 = vunpack.c.l.b16 %v472
        %v581 = vunpack.c.l.b16 %v473
        %v582 = vpack.c.b16 %v575, %v574
        %v583 = vpack.c.b16 %v577, %v576
        %v584 = vpack.c.b16 %v579, %v578
        %v585 = vpack.c.b16 %v581, %v580
        %vm586 = vcmask 261120
        %v588 = vsel %vm586, %v550, 0
        %v591 = vsel %vm586, %v551, 0
        %v594 = vsel %vm586, %v552, 0
        %v597 = vsel %vm586, %v553, 0
        %v600 = vsel %vm586, %v554, 0
        %v603 = vsel %vm586, %v555, 0
        %v606 = vsel %vm586, %v556, 0
        %v609 = vsel %vm586, %v557, 0
        %v612 = vsel %vm586, %v558, 0
        %v615 = vsel %vm586, %v559, 0
        %v618 = vsel %vm586, %v560, 0
        %v621 = vsel %vm586, %v561, 0
        %v624 = vsel %vm586, %v562, 0
        %v627 = vsel %vm586, %v563, 0
        %v630 = vsel %vm586, %v564, 0
        %v633 = vsel %vm586, %v565, 0
        %v636 = vsel %vm586, %v582, 0
        %v639 = vsel %vm586, %v583, 0
        %v642 = vsel %vm586, %v584, 0
        %v645 = vsel %vm586, %v585, 0
        %647 = vmatprep.subr.bf16.mxu0 0
        %648 = vmatpush1.bf16.xpose.msra.mxu0 %v636
        %649 = vmatprep.subr.bf16.mxu0 0
        %650 = vmatpush1.bf16.xpose.msra.mxu0 %v639
        %651 = vmatprep.subr.bf16.mxu0 0
        %652 = vmatpush1.bf16.xpose.msra.mxu0 %v642
        %653 = vmatprep.subr.bf16.mxu0 0
        %654 = vmatpush1.bf16.xpose.msra.mxu0 %v645
        %655 = vmatprep.subr.bf16.mxu0 0
        %656 = vmatpush1.bf16.xpose.msra.mxu0 0
        %657 = vmatprep.subr.bf16.mxu0 0
        %658 = vmatpush1.bf16.xpose.msra.mxu0 0
        %659 = vmatprep.subr.bf16.mxu0 0
        %660 = vmatpush1.bf16.xpose.msra.mxu0 0
        %661 = vmatprep.subr.bf16.mxu0 0
        %662 = vmatpush1.bf16.xpose.msra.mxu0 0
        %663 = vmatprep.subr.bf16.mxu0 0
        %664 = vmatpush1.bf16.xpose.msra.mxu0 0
        %665 = vmatprep.subr.bf16.mxu0 0
        %666 = vmatpush1.bf16.xpose.msra.mxu0 0
        %667 = vmatprep.subr.bf16.mxu0 0
        %668 = vmatpush1.bf16.xpose.msra.mxu0 0
        %669 = vmatprep.subr.bf16.mxu0 0
        %670 = vmatpush1.bf16.xpose.msra.mxu0 0
        %671 = vmatprep.subr.bf16.mxu0 0
        %672 = vmatpush1.bf16.xpose.msra.mxu0 0
        %673 = vmatprep.subr.bf16.mxu0 0
        %674 = vmatpush1.bf16.xpose.msra.mxu0 0
        %675 = vmatprep.subr.bf16.mxu0 0
        %676 = vmatpush1.bf16.xpose.msra.mxu0 0
        %677 = vmatprep.subr.bf16.mxu0 0
        %678 = vmatpush1.bf16.xpose.msra.mxu0 0
        %679 = vmatprep.mubr.bf16.mxu0 0
        %680 = vmatmul.mubr.bf16.gmra.mrb[0].mxu0 %v588
        %v681 = vpop.f32.mrb[0].mxu0
        %v682 = vadd.f32 0.0, %v681
        %v683 = vpop.f32.mrb[0].mxu0
        %v684 = vpop.f32.mrb[0].mxu0
        %v685 = vadd.f32 0.0, %v684
        %v686 = vpop.f32.mrb[0].mxu0
        %687 = vmatprep.mubr.bf16.mxu0 0
        %688 = vmatmul.mubr.bf16.gmra.mrb[0].mxu0 %v591
        %v689 = vpop.f32.mrb[0].mxu0
        %v690 = vadd.f32 0.0, %v689
        %v691 = vpop.f32.mrb[0].mxu0
        %v692 = vpop.f32.mrb[0].mxu0
        %v693 = vadd.f32 0.0, %v692
        %v694 = vpop.f32.mrb[0].mxu0
        %695 = vmatprep.mubr.bf16.mxu0 0
        %696 = vmatmul.mubr.bf16.gmra.mrb[0].mxu0 %v594
        %v697 = vpop.f32.mrb[0].mxu0
        %v698 = vadd.f32 0.0, %v697
        %v699 = vpop.f32.mrb[0].mxu0
        %v700 = vpop.f32.mrb[0].mxu0
        %v701 = vadd.f32 0.0, %v700
        %v702 = vpop.f32.mrb[0].mxu0
        %703 = vmatprep.mubr.bf16.mxu0 0
        %704 = vmatmul.mubr.bf16.gmra.mrb[0].mxu0 %v597
        %v705 = vpop.f32.mrb[0].mxu0
        %v706 = vadd.f32 0.0, %v705
        %v707 = vpop.f32.mrb[0].mxu0
        %v708 = vpop.f32.mrb[0].mxu0
        %v709 = vadd.f32 0.0, %v708
        %v710 = vpop.f32.mrb[0].mxu0
        %711 = vmatprep.mubr.bf16.mxu0 0
        %712 = vmatmul.mubr.bf16.gmra.mrb[0].mxu0 %v600
        %v713 = vpop.f32.mrb[0].mxu0
        %v714 = vadd.f32 0.0, %v713
        %v715 = vpop.f32.mrb[0].mxu0
        %v716 = vpop.f32.mrb[0].mxu0
        %v717 = vadd.f32 0.0, %v716
        %v718 = vpop.f32.mrb[0].mxu0
        %719 = vmatprep.mubr.bf16.mxu0 0
        %720 = vmatmul.mubr.bf16.gmra.mrb[0].mxu0 %v603
        %v721 = vpop.f32.mrb[0].mxu0
        %v722 = vadd.f32 0.0, %v721
        %v723 = vpop.f32.mrb[0].mxu0
        %v724 = vpop.f32.mrb[0].mxu0
        %v725 = vadd.f32 0.0, %v724
        %v726 = vpop.f32.mrb[0].mxu0
        %727 = vmatprep.mubr.bf16.mxu0 0
        %728 = vmatmul.mubr.bf16.gmra.mrb[0].mxu0 %v606
        %v729 = vpop.f32.mrb[0].mxu0
        %v730 = vadd.f32 0.0, %v729
        %v731 = vpop.f32.mrb[0].mxu0
        %v732 = vpop.f32.mrb[0].mxu0
        %v733 = vadd.f32 0.0, %v732
        %v734 = vpop.f32.mrb[0].mxu0
        %735 = vmatprep.mubr.bf16.mxu0 0
        %736 = vmatmul.mubr.bf16.gmra.mrb[0].mxu0 %v609
        %v737 = vpop.f32.mrb[0].mxu0
        %v738 = vadd.f32 0.0, %v737
        %v739 = vpop.f32.mrb[0].mxu0
        %v740 = vpop.f32.mrb[0].mxu0
        %v741 = vadd.f32 0.0, %v740
        %v742 = vpop.f32.mrb[0].mxu0
        %743 = vmatprep.mubr.bf16.mxu0 0
        %744 = vmatmul.mubr.bf16.gmra.mrb[0].mxu0 %v612
        %v745 = vpop.f32.mrb[0].mxu0
        %v746 = vadd.f32 0.0, %v745
        %v747 = vpop.f32.mrb[0].mxu0
        %v748 = vpop.f32.mrb[0].mxu0
        %v749 = vadd.f32 0.0, %v748
        %v750 = vpop.f32.mrb[0].mxu0
        %751 = vmatprep.mubr.bf16.mxu0 0
        %752 = vmatmul.mubr.bf16.gmra.mrb[0].mxu0 %v615
        %v753 = vpop.f32.mrb[0].mxu0
        %v754 = vadd.f32 0.0, %v753
        %v755 = vpop.f32.mrb[0].mxu0
        %v756 = vpop.f32.mrb[0].mxu0
        %v757 = vadd.f32 0.0, %v756
        %v758 = vpop.f32.mrb[0].mxu0
        %759 = vmatprep.mubr.bf16.mxu0 0
        %760 = vmatmul.mubr.bf16.gmra.mrb[0].mxu0 %v618
        %v761 = vpop.f32.mrb[0].mxu0
        %v762 = vadd.f32 0.0, %v761
        %v763 = vpop.f32.mrb[0].mxu0
        %v764 = vpop.f32.mrb[0].mxu0
        %v765 = vadd.f32 0.0, %v764
        %v766 = vpop.f32.mrb[0].mxu0
        %767 = vmatprep.mubr.bf16.mxu0 0
        %768 = vmatmul.mubr.bf16.gmra.mrb[0].mxu0 %v621
        %v769 = vpop.f32.mrb[0].mxu0
        %v770 = vadd.f32 0.0, %v769
        %v771 = vpop.f32.mrb[0].mxu0
        %v772 = vpop.f32.mrb[0].mxu0
        %v773 = vadd.f32 0.0, %v772
        %v774 = vpop.f32.mrb[0].mxu0
        %775 = vmatprep.mubr.bf16.mxu0 0
        %776 = vmatmul.mubr.bf16.gmra.mrb[0].mxu0 %v624
        %v777 = vpop.f32.mrb[0].mxu0
        %v778 = vadd.f32 0.0, %v777
        %v779 = vpop.f32.mrb[0].mxu0
        %v780 = vpop.f32.mrb[0].mxu0
        %v781 = vadd.f32 0.0, %v780
        %v782 = vpop.f32.mrb[0].mxu0
        %783 = vmatprep.mubr.bf16.mxu0 0
        %784 = vmatmul.mubr.bf16.gmra.mrb[0].mxu0 %v627
        %v785 = vpop.f32.mrb[0].mxu0
        %v786 = vadd.f32 0.0, %v785
        %v787 = vpop.f32.mrb[0].mxu0
        %v788 = vpop.f32.mrb[0].mxu0
        %v789 = vadd.f32 0.0, %v788
        %v790 = vpop.f32.mrb[0].mxu0
        %791 = vmatprep.mubr.bf16.mxu0 0
        %792 = vmatmul.mubr.bf16.gmra.mrb[0].mxu0 %v630
        %v793 = vpop.f32.mrb[0].mxu0
        %v794 = vadd.f32 0.0, %v793
        %v795 = vpop.f32.mrb[0].mxu0
        %v796 = vpop.f32.mrb[0].mxu0
        %v797 = vadd.f32 0.0, %v796
        %v798 = vpop.f32.mrb[0].mxu0
        %799 = vmatprep.mubr.bf16.mxu0 0
        %800 = vmatmul.mubr.bf16.gmra.mrb[0].mxu0 %v633
        %v801 = vpop.f32.mrb[0].mxu0
        %v802 = vadd.f32 0.0, %v801
        %v803 = vpop.f32.mrb[0].mxu0
        %v804 = vpop.f32.mrb[0].mxu0
        %v805 = vadd.f32 0.0, %v804
        %v806 = vpop.f32.mrb[0].mxu0
        %807 = vdwg.mxu0
        %v816 = vunpack.c.l.b16 %v474
        %v817 = vunpack.c.l.b16 %v475
        %v818 = vunpack.c.l.b16 %v476
        %v819 = vunpack.c.l.b16 %v477
        %v820 = vunpack.c.l.b16 %v478
        %v821 = vunpack.c.l.b16 %v479
        %v822 = vunpack.c.l.b16 %v480
        %v823 = vunpack.c.l.b16 %v481
        %v824 = vpack.c.b16 %v817, %v816
        %v825 = vpack.c.b16 %v819, %v818
        %v826 = vpack.c.b16 %v821, %v820
        %v827 = vpack.c.b16 %v823, %v822
        %v829 = vsel %vm586, %v824, 0
        %v832 = vsel %vm586, %v825, 0
        %v835 = vsel %vm586, %v826, 0
        %v838 = vsel %vm586, %v827, 0
        %840 = vmatprep.subr.bf16.mxu0 0
        %841 = vmatpush1.bf16.xpose.msra.mxu0 %v829
        %842 = vmatprep.subr.bf16.mxu0 0
        %843 = vmatpush1.bf16.xpose.msra.mxu0 %v832
        %844 = vmatprep.subr.bf16.mxu0 0
        %845 = vmatpush1.bf16.xpose.msra.mxu0 %v835
        %846 = vmatprep.subr.bf16.mxu0 0
        %847 = vmatpush1.bf16.xpose.msra.mxu0 %v838
        %848 = vmatprep.subr.bf16.mxu0 0
        %849 = vmatpush1.bf16.xpose.msra.mxu0 0
        %850 = vmatprep.subr.bf16.mxu0 0
        %851 = vmatpush1.bf16.xpose.msra.mxu0 0
        %852 = vmatprep.subr.bf16.mxu0 0
        %853 = vmatpush1.bf16.xpose.msra.mxu0 0
        %854 = vmatprep.subr.bf16.mxu0 0
        %855 = vmatpush1.bf16.xpose.msra.mxu0 0
        %856 = vmatprep.subr.bf16.mxu0 0
        %857 = vmatpush1.bf16.xpose.msra.mxu0 0
        %858 = vmatprep.subr.bf16.mxu0 0
        %859 = vmatpush1.bf16.xpose.msra.mxu0 0
        %860 = vmatprep.subr.bf16.mxu0 0
        %861 = vmatpush1.bf16.xpose.msra.mxu0 0
        %862 = vmatprep.subr.bf16.mxu0 0
        %863 = vmatpush1.bf16.xpose.msra.mxu0 0
        %864 = vmatprep.subr.bf16.mxu0 0
        %865 = vmatpush1.bf16.xpose.msra.mxu0 0
        %866 = vmatprep.subr.bf16.mxu0 0
        %867 = vmatpush1.bf16.xpose.msra.mxu0 0
        %868 = vmatprep.subr.bf16.mxu0 0
        %869 = vmatpush1.bf16.xpose.msra.mxu0 0
        %870 = vmatprep.subr.bf16.mxu0 0
        %871 = vmatpush1.bf16.xpose.msra.mxu0 0
        %872 = vmatprep.mubr.bf16.mxu0 0
        %873 = vmatmul.mubr.bf16.gmra.mrb[0].mxu0 %v588
        %v874 = vpop.f32.mrb[0].mxu0
        %v875 = vadd.f32 0.0, %v874
        %v876 = vpop.f32.mrb[0].mxu0
        %v877 = vpop.f32.mrb[0].mxu0
        %v878 = vadd.f32 0.0, %v877
        %v879 = vpop.f32.mrb[0].mxu0
        %880 = vmatprep.mubr.bf16.mxu0 0
        %881 = vmatmul.mubr.bf16.gmra.mrb[0].mxu0 %v591
        %v882 = vpop.f32.mrb[0].mxu0
        %v883 = vadd.f32 0.0, %v882
        %v884 = vpop.f32.mrb[0].mxu0
        %v885 = vpop.f32.mrb[0].mxu0
        %v886 = vadd.f32 0.0, %v885
        %v887 = vpop.f32.mrb[0].mxu0
        %888 = vmatprep.mubr.bf16.mxu0 0
        %889 = vmatmul.mubr.bf16.gmra.mrb[0].mxu0 %v594
        %v890 = vpop.f32.mrb[0].mxu0
        %v891 = vadd.f32 0.0, %v890
        %v892 = vpop.f32.mrb[0].mxu0
        %v893 = vpop.f32.mrb[0].mxu0
        %v894 = vadd.f32 0.0, %v893
        %v895 = vpop.f32.mrb[0].mxu0
        %896 = vmatprep.mubr.bf16.mxu0 0
        %897 = vmatmul.mubr.bf16.gmra.mrb[0].mxu0 %v597
        %v898 = vpop.f32.mrb[0].mxu0
        %v899 = vadd.f32 0.0, %v898
        %v900 = vpop.f32.mrb[0].mxu0
        %v901 = vpop.f32.mrb[0].mxu0
        %v902 = vadd.f32 0.0, %v901
        %v903 = vpop.f32.mrb[0].mxu0
        %904 = vmatprep.mubr.bf16.mxu0 0
        %905 = vmatmul.mubr.bf16.gmra.mrb[0].mxu0 %v600
        %v906 = vpop.f32.mrb[0].mxu0
        %v907 = vadd.f32 0.0, %v906
        %v908 = vpop.f32.mrb[0].mxu0
        %v909 = vpop.f32.mrb[0].mxu0
        %v910 = vadd.f32 0.0, %v909
        %v911 = vpop.f32.mrb[0].mxu0
        %912 = vmatprep.mubr.bf16.mxu0 0
        %913 = vmatmul.mubr.bf16.gmra.mrb[0].mxu0 %v603
        %v914 = vpop.f32.mrb[0].mxu0
        %v915 = vadd.f32 0.0, %v914
        %v916 = vpop.f32.mrb[0].mxu0
        %v917 = vpop.f32.mrb[0].mxu0
        %v918 = vadd.f32 0.0, %v917
        %v919 = vpop.f32.mrb[0].mxu0
        %920 = vmatprep.mubr.bf16.mxu0 0
        %921 = vmatmul.mubr.bf16.gmra.mrb[0].mxu0 %v606
        %v922 = vpop.f32.mrb[0].mxu0
        %v923 = vadd.f32 0.0, %v922
        %v924 = vpop.f32.mrb[0].mxu0
        %v925 = vpop.f32.mrb[0].mxu0
        %v926 = vadd.f32 0.0, %v925
        %v927 = vpop.f32.mrb[0].mxu0
        %928 = vmatprep.mubr.bf16.mxu0 0
        %929 = vmatmul.mubr.bf16.gmra.mrb[0].mxu0 %v609
        %v930 = vpop.f32.mrb[0].mxu0
        %v931 = vadd.f32 0.0, %v930
        %v932 = vpop.f32.mrb[0].mxu0
        %v933 = vpop.f32.mrb[0].mxu0
        %v934 = vadd.f32 0.0, %v933
        %v935 = vpop.f32.mrb[0].mxu0
        %936 = vmatprep.mubr.bf16.mxu0 0
        %937 = vmatmul.mubr.bf16.gmra.mrb[0].mxu0 %v612
        %v938 = vpop.f32.mrb[0].mxu0
        %v939 = vadd.f32 0.0, %v938
        %v940 = vpop.f32.mrb[0].mxu0
        %v941 = vpop.f32.mrb[0].mxu0
        %v942 = vadd.f32 0.0, %v941
        %v943 = vpop.f32.mrb[0].mxu0
        %944 = vmatprep.mubr.bf16.mxu0 0
        %945 = vmatmul.mubr.bf16.gmra.mrb[0].mxu0 %v615
        %v946 = vpop.f32.mrb[0].mxu0
        %v947 = vadd.f32 0.0, %v946
        %v948 = vpop.f32.mrb[0].mxu0
        %v949 = vpop.f32.mrb[0].mxu0
        %v950 = vadd.f32 0.0, %v949
        %v951 = vpop.f32.mrb[0].mxu0
        %952 = vmatprep.mubr.bf16.mxu0 0
        %953 = vmatmul.mubr.bf16.gmra.mrb[0].mxu0 %v618
        %v954 = vpop.f32.mrb[0].mxu0
        %v955 = vadd.f32 0.0, %v954
        %v956 = vpop.f32.mrb[0].mxu0
        %v957 = vpop.f32.mrb[0].mxu0
        %v958 = vadd.f32 0.0, %v957
        %v959 = vpop.f32.mrb[0].mxu0
        %960 = vmatprep.mubr.bf16.mxu0 0
        %961 = vmatmul.mubr.bf16.gmra.mrb[0].mxu0 %v621
        %v962 = vpop.f32.mrb[0].mxu0
        %v963 = vadd.f32 0.0, %v962
        %v964 = vpop.f32.mrb[0].mxu0
        %v965 = vpop.f32.mrb[0].mxu0
        %v966 = vadd.f32 0.0, %v965
        %v967 = vpop.f32.mrb[0].mxu0
        %968 = vmatprep.mubr.bf16.mxu0 0
        %969 = vmatmul.mubr.bf16.gmra.mrb[0].mxu0 %v624
        %v970 = vpop.f32.mrb[0].mxu0
        %v971 = vadd.f32 0.0, %v970
        %v972 = vpop.f32.mrb[0].mxu0
        %v973 = vpop.f32.mrb[0].mxu0
        %v974 = vadd.f32 0.0, %v973
        %v975 = vpop.f32.mrb[0].mxu0
        %976 = vmatprep.mubr.bf16.mxu0 0
        %977 = vmatmul.mubr.bf16.gmra.mrb[0].mxu0 %v627
        %v978 = vpop.f32.mrb[0].mxu0
        %v979 = vadd.f32 0.0, %v978
        %v980 = vpop.f32.mrb[0].mxu0
        %v981 = vpop.f32.mrb[0].mxu0
        %v982 = vadd.f32 0.0, %v981
        %v983 = vpop.f32.mrb[0].mxu0
        %984 = vmatprep.mubr.bf16.mxu0 0
        %985 = vmatmul.mubr.bf16.gmra.mrb[0].mxu0 %v630
        %v986 = vpop.f32.mrb[0].mxu0
        %v987 = vadd.f32 0.0, %v986
        %v988 = vpop.f32.mrb[0].mxu0
        %v989 = vpop.f32.mrb[0].mxu0
        %v990 = vadd.f32 0.0, %v989
        %v991 = vpop.f32.mrb[0].mxu0
        %992 = vmatprep.mubr.bf16.mxu0 0
        %993 = vmatmul.mubr.bf16.gmra.mrb[0].mxu0 %v633
        %v994 = vpop.f32.mrb[0].mxu0
        %v995 = vadd.f32 0.0, %v994
        %v996 = vpop.f32.mrb[0].mxu0
        %v997 = vpop.f32.mrb[0].mxu0
        %v998 = vadd.f32 0.0, %v997
        %v999 = vpop.f32.mrb[0].mxu0
        %1000 = vdwg.mxu0
        %v1001 = vxor.u32 %v682, 2147483648
        %v1002 = vxor.u32 %v685, 2147483648
        %v1003 = vxor.u32 %v690, 2147483648
        %v1004 = vxor.u32 %v693, 2147483648
        %v1005 = vxor.u32 %v698, 2147483648
        %v1006 = vxor.u32 %v701, 2147483648
        %v1007 = vxor.u32 %v706, 2147483648
        %v1008 = vxor.u32 %v709, 2147483648
        %v1009 = vxor.u32 %v714, 2147483648
        %v1010 = vxor.u32 %v717, 2147483648
        %v1011 = vxor.u32 %v722, 2147483648
        %v1012 = vxor.u32 %v725, 2147483648
        %v1013 = vxor.u32 %v730, 2147483648
        %v1014 = vxor.u32 %v733, 2147483648
        %v1015 = vxor.u32 %v738, 2147483648
        %v1016 = vxor.u32 %v741, 2147483648
        %v1017 = vxor.u32 %v746, 2147483648
        %v1018 = vxor.u32 %v749, 2147483648
        %v1019 = vxor.u32 %v754, 2147483648
        %v1020 = vxor.u32 %v757, 2147483648
        %v1021 = vxor.u32 %v762, 2147483648
        %v1022 = vxor.u32 %v765, 2147483648
        %v1023 = vxor.u32 %v770, 2147483648
        %v1024 = vxor.u32 %v773, 2147483648
        %v1025 = vxor.u32 %v778, 2147483648
        %v1026 = vxor.u32 %v781, 2147483648
        %v1027 = vxor.u32 %v786, 2147483648
        %v1028 = vxor.u32 %v789, 2147483648
        %v1029 = vxor.u32 %v794, 2147483648
        %v1030 = vxor.u32 %v797, 2147483648
        %v1031 = vxor.u32 %v802, 2147483648
        %v1032 = vxor.u32 %v805, 2147483648
        %v1033 = vmul.f32 %v1001, 1.442695
        %v1034 = vpow.pop %v1033
        %v1035 = vmul.f32 %v1002, 1.442695
        %v1036 = vpow.pop %v1035
        %v1037 = vmul.f32 %v1003, 1.442695
        %v1038 = vpow.pop %v1037
        %v1039 = vmul.f32 %v1004, 1.442695
        %v1040 = vpow.pop %v1039
        %v1041 = vmul.f32 %v1005, 1.442695
        %v1042 = vpow.pop %v1041
        %v1043 = vmul.f32 %v1006, 1.442695
        %v1044 = vpow.pop %v1043
        %v1045 = vmul.f32 %v1007, 1.442695
        %v1046 = vpow.pop %v1045
        %v1047 = vmul.f32 %v1008, 1.442695
        %v1048 = vpow.pop %v1047
        %v1049 = vmul.f32 %v1009, 1.442695
        %v1050 = vpow.pop %v1049
        %v1051 = vmul.f32 %v1010, 1.442695
        %v1052 = vpow.pop %v1051
        %v1053 = vmul.f32 %v1011, 1.442695
        %v1054 = vpow.pop %v1053
        %v1055 = vmul.f32 %v1012, 1.442695
        %v1056 = vpow.pop %v1055
        %v1057 = vmul.f32 %v1013, 1.442695
        %v1058 = vpow.pop %v1057
        %v1059 = vmul.f32 %v1014, 1.442695
        %v1060 = vpow.pop %v1059
        %v1061 = vmul.f32 %v1015, 1.442695
        %v1062 = vpow.pop %v1061
        %v1063 = vmul.f32 %v1016, 1.442695
        %v1064 = vpow.pop %v1063
        %v1065 = vmul.f32 %v1017, 1.442695
        %v1066 = vpow.pop %v1065
        %v1067 = vmul.f32 %v1018, 1.442695
        %v1068 = vpow.pop %v1067
        %v1069 = vmul.f32 %v1019, 1.442695
        %v1070 = vpow.pop %v1069
        %v1071 = vmul.f32 %v1020, 1.442695
        %v1072 = vpow.pop %v1071
        %v1073 = vmul.f32 %v1021, 1.442695
        %v1074 = vpow.pop %v1073
        %v1075 = vmul.f32 %v1022, 1.442695
        %v1076 = vpow.pop %v1075
        %v1077 = vmul.f32 %v1023, 1.442695
        %v1078 = vpow.pop %v1077
        %v1079 = vmul.f32 %v1024, 1.442695
        %v1080 = vpow.pop %v1079
        %v1081 = vmul.f32 %v1025, 1.442695
        %v1082 = vpow.pop %v1081
        %v1083 = vmul.f32 %v1026, 1.442695
        %v1084 = vpow.pop %v1083
        %v1085 = vmul.f32 %v1027, 1.442695
        %v1086 = vpow.pop %v1085
        %v1087 = vmul.f32 %v1028, 1.442695
        %v1088 = vpow.pop %v1087
        %v1089 = vmul.f32 %v1029, 1.442695
        %v1090 = vpow.pop %v1089
        %v1091 = vmul.f32 %v1030, 1.442695
        %v1092 = vpow.pop %v1091
        %v1093 = vmul.f32 %v1031, 1.442695
        %v1094 = vpow.pop %v1093
        %v1095 = vmul.f32 %v1032, 1.442695
        %v1096 = vpow.pop %v1095
        %v1097 = vadd.f32 %v1034, 1.0
        %v1098 = vadd.f32 %v1036, 1.0
        %v1099 = vadd.f32 %v1038, 1.0
        %v1100 = vadd.f32 %v1040, 1.0
        %v1101 = vadd.f32 %v1042, 1.0
        %v1102 = vadd.f32 %v1044, 1.0
        %v1103 = vadd.f32 %v1046, 1.0
        %v1104 = vadd.f32 %v1048, 1.0
        %v1105 = vadd.f32 %v1050, 1.0
        %v1106 = vadd.f32 %v1052, 1.0
        %v1107 = vadd.f32 %v1054, 1.0
        %v1108 = vadd.f32 %v1056, 1.0
        %v1109 = vadd.f32 %v1058, 1.0
        %v1110 = vadd.f32 %v1060, 1.0
        %v1111 = vadd.f32 %v1062, 1.0
        %v1112 = vadd.f32 %v1064, 1.0
        %v1113 = vadd.f32 %v1066, 1.0
        %v1114 = vadd.f32 %v1068, 1.0
        %v1115 = vadd.f32 %v1070, 1.0
        %v1116 = vadd.f32 %v1072, 1.0
        %v1117 = vadd.f32 %v1074, 1.0
        %v1118 = vadd.f32 %v1076, 1.0
        %v1119 = vadd.f32 %v1078, 1.0
        %v1120 = vadd.f32 %v1080, 1.0
        %v1121 = vadd.f32 %v1082, 1.0
        %v1122 = vadd.f32 %v1084, 1.0
        %v1123 = vadd.f32 %v1086, 1.0
        %v1124 = vadd.f32 %v1088, 1.0
        %v1125 = vadd.f32 %v1090, 1.0
        %v1126 = vadd.f32 %v1092, 1.0
        %v1127 = vadd.f32 %v1094, 1.0
        %v1128 = vadd.f32 %v1096, 1.0
        %v1129 = vrcp.pop %v1097
        %v1130 = vmul.f32 1.0, %v1129
        %v1131 = vrcp.pop %v1098
        %v1132 = vmul.f32 1.0, %v1131
        %v1133 = vrcp.pop %v1099
        %v1134 = vmul.f32 1.0, %v1133
        %v1135 = vrcp.pop %v1100
        %v1136 = vmul.f32 1.0, %v1135
        %v1137 = vrcp.pop %v1101
        %v1138 = vmul.f32 1.0, %v1137
        %v1139 = vrcp.pop %v1102
        %v1140 = vmul.f32 1.0, %v1139
        %v1141 = vrcp.pop %v1103
        %v1142 = vmul.f32 1.0, %v1141
        %v1143 = vrcp.pop %v1104
        %v1144 = vmul.f32 1.0, %v1143
        %v1145 = vrcp.pop %v1105
        %v1146 = vmul.f32 1.0, %v1145
        %v1147 = vrcp.pop %v1106
        %v1148 = vmul.f32 1.0, %v1147
        %v1149 = vrcp.pop %v1107
        %v1150 = vmul.f32 1.0, %v1149
        %v1151 = vrcp.pop %v1108
        %v1152 = vmul.f32 1.0, %v1151
        %v1153 = vrcp.pop %v1109
        %v1154 = vmul.f32 1.0, %v1153
        %v1155 = vrcp.pop %v1110
        %v1156 = vmul.f32 1.0, %v1155
        %v1157 = vrcp.pop %v1111
        %v1158 = vmul.f32 1.0, %v1157
        %v1159 = vrcp.pop %v1112
        %v1160 = vmul.f32 1.0, %v1159
        %v1161 = vrcp.pop %v1113
        %v1162 = vmul.f32 1.0, %v1161
        %v1163 = vrcp.pop %v1114
        %v1164 = vmul.f32 1.0, %v1163
        %v1165 = vrcp.pop %v1115
        %v1166 = vmul.f32 1.0, %v1165
        %v1167 = vrcp.pop %v1116
        %v1168 = vmul.f32 1.0, %v1167
        %v1169 = vrcp.pop %v1117
        %v1170 = vmul.f32 1.0, %v1169
        %v1171 = vrcp.pop %v1118
        %v1172 = vmul.f32 1.0, %v1171
        %v1173 = vrcp.pop %v1119
        %v1174 = vmul.f32 1.0, %v1173
        %v1175 = vrcp.pop %v1120
        %v1176 = vmul.f32 1.0, %v1175
        %v1177 = vrcp.pop %v1121
        %v1178 = vmul.f32 1.0, %v1177
        %v1179 = vrcp.pop %v1122
        %v1180 = vmul.f32 1.0, %v1179
        %v1181 = vrcp.pop %v1123
        %v1182 = vmul.f32 1.0, %v1181
        %v1183 = vrcp.pop %v1124
        %v1184 = vmul.f32 1.0, %v1183
        %v1185 = vrcp.pop %v1125
        %v1186 = vmul.f32 1.0, %v1185
        %v1187 = vrcp.pop %v1126
        %v1188 = vmul.f32 1.0, %v1187
        %v1189 = vrcp.pop %v1127
        %v1190 = vmul.f32 1.0, %v1189
        %v1191 = vrcp.pop %v1128
        %v1192 = vmul.f32 1.0, %v1191
        %v1193 = vmul.f32 %v682, %v1130
        %v1194 = vmul.f32 %v685, %v1132
        %v1195 = vmul.f32 %v690, %v1134
        %v1196 = vmul.f32 %v693, %v1136
        %v1197 = vmul.f32 %v698, %v1138
        %v1198 = vmul.f32 %v701, %v1140
        %v1199 = vmul.f32 %v706, %v1142
        %v1200 = vmul.f32 %v709, %v1144
        %v1201 = vmul.f32 %v714, %v1146
        %v1202 = vmul.f32 %v717, %v1148
        %v1203 = vmul.f32 %v722, %v1150
        %v1204 = vmul.f32 %v725, %v1152
        %v1205 = vmul.f32 %v730, %v1154
        %v1206 = vmul.f32 %v733, %v1156
        %v1207 = vmul.f32 %v738, %v1158
        %v1208 = vmul.f32 %v741, %v1160
        %v1209 = vmul.f32 %v746, %v1162
        %v1210 = vmul.f32 %v749, %v1164
        %v1211 = vmul.f32 %v754, %v1166
        %v1212 = vmul.f32 %v757, %v1168
        %v1213 = vmul.f32 %v762, %v1170
        %v1214 = vmul.f32 %v765, %v1172
        %v1215 = vmul.f32 %v770, %v1174
        %v1216 = vmul.f32 %v773, %v1176
        %v1217 = vmul.f32 %v778, %v1178
        %v1218 = vmul.f32 %v781, %v1180
        %v1219 = vmul.f32 %v786, %v1182
        %v1220 = vmul.f32 %v789, %v1184
        %v1221 = vmul.f32 %v794, %v1186
        %v1222 = vmul.f32 %v797, %v1188
        %v1223 = vmul.f32 %v802, %v1190
        %v1224 = vmul.f32 %v805, %v1192
        %v1225 = vmul.f32 %v1193, %v875
        %v1226 = vmul.f32 %v1194, %v878
        %v1227 = vmul.f32 %v1195, %v883
        %v1228 = vmul.f32 %v1196, %v886
        %v1229 = vmul.f32 %v1197, %v891
        %v1230 = vmul.f32 %v1198, %v894
        %v1231 = vmul.f32 %v1199, %v899
        %v1232 = vmul.f32 %v1200, %v902
        %v1233 = vmul.f32 %v1201, %v907
        %v1234 = vmul.f32 %v1202, %v910
        %v1235 = vmul.f32 %v1203, %v915
        %v1236 = vmul.f32 %v1204, %v918
        %v1237 = vmul.f32 %v1205, %v923
        %v1238 = vmul.f32 %v1206, %v926
        %v1239 = vmul.f32 %v1207, %v931
        %v1240 = vmul.f32 %v1208, %v934
        %v1241 = vmul.f32 %v1209, %v939
        %v1242 = vmul.f32 %v1210, %v942
        %v1243 = vmul.f32 %v1211, %v947
        %v1244 = vmul.f32 %v1212, %v950
        %v1245 = vmul.f32 %v1213, %v955
        %v1246 = vmul.f32 %v1214, %v958
        %v1247 = vmul.f32 %v1215, %v963
        %v1248 = vmul.f32 %v1216, %v966
        %v1249 = vmul.f32 %v1217, %v971
        %v1250 = vmul.f32 %v1218, %v974
        %v1251 = vmul.f32 %v1219, %v979
        %v1252 = vmul.f32 %v1220, %v982
        %v1253 = vmul.f32 %v1221, %v987
        %v1254 = vmul.f32 %v1222, %v990
        %v1255 = vmul.f32 %v1223, %v995
        %v1256 = vmul.f32 %v1224, %v998
        %v1257 = vld [vmem:[#allocation2] sm:$0xff]
        %v1258 = vld [vmem:[#allocation2 + $0x8] sm:$0xff]
        %v1259 = vld [vmem:[#allocation2 + $0x10] sm:$0xff]
        %v1260 = vld [vmem:[#allocation2 + $0x18] sm:$0xff]
        %v1261 = vld [vmem:[#allocation2 + $0x20] sm:$0xff]
        %v1262 = vld [vmem:[#allocation2 + $0x28] sm:$0xff]
        %v1263 = vld [vmem:[#allocation2 + $0x30] sm:$0xff]
        %v1264 = vld [vmem:[#allocation2 + $0x38] sm:$0xff]
        %v1265 = vld [vmem:[#allocation2 + $0x40] sm:$0xff]
        %v1266 = vld [vmem:[#allocation2 + $0x48] sm:$0xff]
        %v1267 = vld [vmem:[#allocation2 + $0x50] sm:$0xff]
        %v1268 = vld [vmem:[#allocation2 + $0x58] sm:$0xff]
        %v1269 = vld [vmem:[#allocation2 + $0x60] sm:$0xff]
        %v1270 = vld [vmem:[#allocation2 + $0x68] sm:$0xff]
        %v1271 = vld [vmem:[#allocation2 + $0x70] sm:$0xff]
        %v1272 = vld [vmem:[#allocation2 + $0x78] sm:$0xff]
        %v1273 = vld [vmem:[#allocation2 + $0x80] sm:$0xff]
        %v1274 = vld [vmem:[#allocation2 + $0x88] sm:$0xff]
        %v1275 = vld [vmem:[#allocation2 + $0x90] sm:$0xff]
        %v1276 = vld [vmem:[#allocation2 + $0x98] sm:$0xff]
        %v1277 = vld [vmem:[#allocation2 + $0xa0] sm:$0xff]
        %v1278 = vld [vmem:[#allocation2 + $0xa8] sm:$0xff]
        %v1279 = vld [vmem:[#allocation2 + $0xb0] sm:$0xff]
        %v1280 = vld [vmem:[#allocation2 + $0xb8] sm:$0xff]
        %v1281 = vld [vmem:[#allocation2 + $0xc0] sm:$0xff]
        %v1282 = vld [vmem:[#allocation2 + $0xc8] sm:$0xff]
        %v1283 = vld [vmem:[#allocation2 + $0xd0] sm:$0xff]
        %v1284 = vld [vmem:[#allocation2 + $0xd8] sm:$0xff]
        %v1285 = vld [vmem:[#allocation2 + $0xe0] sm:$0xff]
        %v1286 = vld [vmem:[#allocation2 + $0xe8] sm:$0xff]
        %v1287 = vld [vmem:[#allocation2 + $0xf0] sm:$0xff]
        %v1288 = vld [vmem:[#allocation2 + $0xf8] sm:$0xff]
        %v1289 = vpack.c.bf16 %v1226, %v1225
        %v1290 = vpack.c.bf16 %v1228, %v1227
        %v1291 = vpack.c.bf16 %v1230, %v1229
        %v1292 = vpack.c.bf16 %v1232, %v1231
        %v1293 = vpack.c.bf16 %v1234, %v1233
        %v1294 = vpack.c.bf16 %v1236, %v1235
        %v1295 = vpack.c.bf16 %v1238, %v1237
        %v1296 = vpack.c.bf16 %v1240, %v1239
        %v1297 = vpack.c.bf16 %v1242, %v1241
        %v1298 = vpack.c.bf16 %v1244, %v1243
        %v1299 = vpack.c.bf16 %v1246, %v1245
        %v1300 = vpack.c.bf16 %v1248, %v1247
        %v1301 = vpack.c.bf16 %v1250, %v1249
        %v1302 = vpack.c.bf16 %v1252, %v1251
        %v1303 = vpack.c.bf16 %v1254, %v1253
        %v1304 = vpack.c.bf16 %v1256, %v1255
        %v1309 = vunpack.c.l.b16 %v482
        %v1310 = vunpack.c.l.b16 %v483
        %v1311 = vunpack.c.l.b16 %v484
        %v1312 = vunpack.c.l.b16 %v485
        %v1313 = vpack.c.b16 %v1310, %v1309
        %v1314 = vpack.c.b16 %v1312, %v1311
        %vm1315 = vcmask 523264
        %v1317 = vsel %vm1315, %v1289, 0
        %v1320 = vsel %vm1315, %v1290, 0
        %v1323 = vsel %vm1315, %v1291, 0
        %v1326 = vsel %vm1315, %v1292, 0
        %v1329 = vsel %vm1315, %v1293, 0
        %v1332 = vsel %vm1315, %v1294, 0
        %v1335 = vsel %vm1315, %v1295, 0
        %v1338 = vsel %vm1315, %v1296, 0
        %v1341 = vsel %vm1315, %v1297, 0
        %v1344 = vsel %vm1315, %v1298, 0
        %v1347 = vsel %vm1315, %v1299, 0
        %v1350 = vsel %vm1315, %v1300, 0
        %v1353 = vsel %vm1315, %v1301, 0
        %v1356 = vsel %vm1315, %v1302, 0
        %v1359 = vsel %vm1315, %v1303, 0
        %v1362 = vsel %vm1315, %v1304, 0
        %v1365 = vsel %vm1315, %v1313, 0
        %v1368 = vsel %vm1315, %v1314, 0
        %1370 = vmatprep.subr.bf16.mxu0 0
        %1371 = vmatpush1.bf16.xpose.msra.mxu0 %v1365
        %1372 = vmatprep.subr.bf16.mxu0 0
        %1373 = vmatpush1.bf16.xpose.msra.mxu0 %v1368
        %1374 = vmatprep.subr.bf16.mxu0 0
        %1375 = vmatpush1.bf16.xpose.msra.mxu0 0
        %1376 = vmatprep.subr.bf16.mxu0 0
        %1377 = vmatpush1.bf16.xpose.msra.mxu0 0
        %1378 = vmatprep.subr.bf16.mxu0 0
        %1379 = vmatpush1.bf16.xpose.msra.mxu0 0
        %1380 = vmatprep.subr.bf16.mxu0 0
        %1381 = vmatpush1.bf16.xpose.msra.mxu0 0
        %1382 = vmatprep.subr.bf16.mxu0 0
        %1383 = vmatpush1.bf16.xpose.msra.mxu0 0
        %1384 = vmatprep.subr.bf16.mxu0 0
        %1385 = vmatpush1.bf16.xpose.msra.mxu0 0
        %1386 = vmatprep.subr.bf16.mxu0 0
        %1387 = vmatpush1.bf16.xpose.msra.mxu0 0
        %1388 = vmatprep.subr.bf16.mxu0 0
        %1389 = vmatpush1.bf16.xpose.msra.mxu0 0
        %1390 = vmatprep.subr.bf16.mxu0 0
        %1391 = vmatpush1.bf16.xpose.msra.mxu0 0
        %1392 = vmatprep.subr.bf16.mxu0 0
        %1393 = vmatpush1.bf16.xpose.msra.mxu0 0
        %1394 = vmatprep.subr.bf16.mxu0 0
        %1395 = vmatpush1.bf16.xpose.msra.mxu0 0
        %1396 = vmatprep.subr.bf16.mxu0 0
        %1397 = vmatpush1.bf16.xpose.msra.mxu0 0
        %1398 = vmatprep.subr.bf16.mxu0 0
        %1399 = vmatpush1.bf16.xpose.msra.mxu0 0
        %1400 = vmatprep.subr.bf16.mxu0 0
        %1401 = vmatpush1.bf16.xpose.msra.mxu0 0
        %1402 = vmatprep.mubr.bf16.mxu0 0
        %1403 = vmatmul.mubr.bf16.gmra.mrb[0].mxu0 %v1317
        %v1404 = vpop.f32.mrb[0].mxu0
        %v1405 = vadd.f32 0.0, %v1404
        %v1406 = vpop.f32.mrb[0].mxu0
        %v1407 = vpop.f32.mrb[0].mxu0
        %v1408 = vadd.f32 0.0, %v1407
        %v1409 = vpop.f32.mrb[0].mxu0
        %1410 = vmatprep.mubr.bf16.mxu0 0
        %1411 = vmatmul.mubr.bf16.gmra.mrb[0].mxu0 %v1320
        %v1412 = vpop.f32.mrb[0].mxu0
        %v1413 = vadd.f32 0.0, %v1412
        %v1414 = vpop.f32.mrb[0].mxu0
        %v1415 = vpop.f32.mrb[0].mxu0
        %v1416 = vadd.f32 0.0, %v1415
        %v1417 = vpop.f32.mrb[0].mxu0
        %1418 = vmatprep.mubr.bf16.mxu0 0
        %1419 = vmatmul.mubr.bf16.gmra.mrb[0].mxu0 %v1323
        %v1420 = vpop.f32.mrb[0].mxu0
        %v1421 = vadd.f32 0.0, %v1420
        %v1422 = vpop.f32.mrb[0].mxu0
        %v1423 = vpop.f32.mrb[0].mxu0
        %v1424 = vadd.f32 0.0, %v1423
        %v1425 = vpop.f32.mrb[0].mxu0
        %1426 = vmatprep.mubr.bf16.mxu0 0
        %1427 = vmatmul.mubr.bf16.gmra.mrb[0].mxu0 %v1326
        %v1428 = vpop.f32.mrb[0].mxu0
        %v1429 = vadd.f32 0.0, %v1428
        %v1430 = vpop.f32.mrb[0].mxu0
        %v1431 = vpop.f32.mrb[0].mxu0
        %v1432 = vadd.f32 0.0, %v1431
        %v1433 = vpop.f32.mrb[0].mxu0
        %1434 = vmatprep.mubr.bf16.mxu0 0
        %1435 = vmatmul.mubr.bf16.gmra.mrb[0].mxu0 %v1329
        %v1436 = vpop.f32.mrb[0].mxu0
        %v1437 = vadd.f32 0.0, %v1436
        %v1438 = vpop.f32.mrb[0].mxu0
        %v1439 = vpop.f32.mrb[0].mxu0
        %v1440 = vadd.f32 0.0, %v1439
        %v1441 = vpop.f32.mrb[0].mxu0
        %1442 = vmatprep.mubr.bf16.mxu0 0
        %1443 = vmatmul.mubr.bf16.gmra.mrb[0].mxu0 %v1332
        %v1444 = vpop.f32.mrb[0].mxu0
        %v1445 = vadd.f32 0.0, %v1444
        %v1446 = vpop.f32.mrb[0].mxu0
        %v1447 = vpop.f32.mrb[0].mxu0
        %v1448 = vadd.f32 0.0, %v1447
        %v1449 = vpop.f32.mrb[0].mxu0
        %1450 = vmatprep.mubr.bf16.mxu0 0
        %1451 = vmatmul.mubr.bf16.gmra.mrb[0].mxu0 %v1335
        %v1452 = vpop.f32.mrb[0].mxu0
        %v1453 = vadd.f32 0.0, %v1452
        %v1454 = vpop.f32.mrb[0].mxu0
        %v1455 = vpop.f32.mrb[0].mxu0
        %v1456 = vadd.f32 0.0, %v1455
        %v1457 = vpop.f32.mrb[0].mxu0
        %1458 = vmatprep.mubr.bf16.mxu0 0
        %1459 = vmatmul.mubr.bf16.gmra.mrb[0].mxu0 %v1338
        %v1460 = vpop.f32.mrb[0].mxu0
        %v1461 = vadd.f32 0.0, %v1460
        %v1462 = vpop.f32.mrb[0].mxu0
        %v1463 = vpop.f32.mrb[0].mxu0
        %v1464 = vadd.f32 0.0, %v1463
        %v1465 = vpop.f32.mrb[0].mxu0
        %1466 = vmatprep.mubr.bf16.mxu0 0
        %1467 = vmatmul.mubr.bf16.gmra.mrb[0].mxu0 %v1341
        %v1468 = vpop.f32.mrb[0].mxu0
        %v1469 = vadd.f32 0.0, %v1468
        %v1470 = vpop.f32.mrb[0].mxu0
        %v1471 = vpop.f32.mrb[0].mxu0
        %v1472 = vadd.f32 0.0, %v1471
        %v1473 = vpop.f32.mrb[0].mxu0
        %1474 = vmatprep.mubr.bf16.mxu0 0
        %1475 = vmatmul.mubr.bf16.gmra.mrb[0].mxu0 %v1344
        %v1476 = vpop.f32.mrb[0].mxu0
        %v1477 = vadd.f32 0.0, %v1476
        %v1478 = vpop.f32.mrb[0].mxu0
        %v1479 = vpop.f32.mrb[0].mxu0
        %v1480 = vadd.f32 0.0, %v1479
        %v1481 = vpop.f32.mrb[0].mxu0
        %1482 = vmatprep.mubr.bf16.mxu0 0
        %1483 = vmatmul.mubr.bf16.gmra.mrb[0].mxu0 %v1347
        %v1484 = vpop.f32.mrb[0].mxu0
        %v1485 = vadd.f32 0.0, %v1484
        %v1486 = vpop.f32.mrb[0].mxu0
        %v1487 = vpop.f32.mrb[0].mxu0
        %v1488 = vadd.f32 0.0, %v1487
        %v1489 = vpop.f32.mrb[0].mxu0
        %1490 = vmatprep.mubr.bf16.mxu0 0
        %1491 = vmatmul.mubr.bf16.gmra.mrb[0].mxu0 %v1350
        %v1492 = vpop.f32.mrb[0].mxu0
        %v1493 = vadd.f32 0.0, %v1492
        %v1494 = vpop.f32.mrb[0].mxu0
        %v1495 = vpop.f32.mrb[0].mxu0
        %v1496 = vadd.f32 0.0, %v1495
        %v1497 = vpop.f32.mrb[0].mxu0
        %1498 = vmatprep.mubr.bf16.mxu0 0
        %1499 = vmatmul.mubr.bf16.gmra.mrb[0].mxu0 %v1353
        %v1500 = vpop.f32.mrb[0].mxu0
        %v1501 = vadd.f32 0.0, %v1500
        %v1502 = vpop.f32.mrb[0].mxu0
        %v1503 = vpop.f32.mrb[0].mxu0
        %v1504 = vadd.f32 0.0, %v1503
        %v1505 = vpop.f32.mrb[0].mxu0
        %1506 = vmatprep.mubr.bf16.mxu0 0
        %1507 = vmatmul.mubr.bf16.gmra.mrb[0].mxu0 %v1356
        %v1508 = vpop.f32.mrb[0].mxu0
        %v1509 = vadd.f32 0.0, %v1508
        %v1510 = vpop.f32.mrb[0].mxu0
        %v1511 = vpop.f32.mrb[0].mxu0
        %v1512 = vadd.f32 0.0, %v1511
        %v1513 = vpop.f32.mrb[0].mxu0
        %1514 = vmatprep.mubr.bf16.mxu0 0
        %1515 = vmatmul.mubr.bf16.gmra.mrb[0].mxu0 %v1359
        %v1516 = vpop.f32.mrb[0].mxu0
        %v1517 = vadd.f32 0.0, %v1516
        %v1518 = vpop.f32.mrb[0].mxu0
        %v1519 = vpop.f32.mrb[0].mxu0
        %v1520 = vadd.f32 0.0, %v1519
        %v1521 = vpop.f32.mrb[0].mxu0
        %1522 = vmatprep.mubr.bf16.mxu0 0
        %1523 = vmatmul.mubr.bf16.gmra.mrb[0].mxu0 %v1362
        %v1524 = vpop.f32.mrb[0].mxu0
        %v1525 = vadd.f32 0.0, %v1524
        %v1526 = vpop.f32.mrb[0].mxu0
        %v1527 = vpop.f32.mrb[0].mxu0
        %v1528 = vadd.f32 0.0, %v1527
        %v1529 = vpop.f32.mrb[0].mxu0
        %1530 = vdwg.mxu0
        %v1531 = vadd.f32 %v1257, %v1405
        %v1532 = vadd.f32 %v1258, %v1408
        %v1533 = vadd.f32 %v1259, %v1413
        %v1534 = vadd.f32 %v1260, %v1416
        %v1535 = vadd.f32 %v1261, %v1421
        %v1536 = vadd.f32 %v1262, %v1424
        %v1537 = vadd.f32 %v1263, %v1429
        %v1538 = vadd.f32 %v1264, %v1432
        %v1539 = vadd.f32 %v1265, %v1437
        %v1540 = vadd.f32 %v1266, %v1440
        %v1541 = vadd.f32 %v1267, %v1445
        %v1542 = vadd.f32 %v1268, %v1448
        %v1543 = vadd.f32 %v1269, %v1453
        %v1544 = vadd.f32 %v1270, %v1456
        %v1545 = vadd.f32 %v1271, %v1461
        %v1546 = vadd.f32 %v1272, %v1464
        %v1547 = vadd.f32 %v1273, %v1469
        %v1548 = vadd.f32 %v1274, %v1472
        %v1549 = vadd.f32 %v1275, %v1477
        %v1550 = vadd.f32 %v1276, %v1480
        %v1551 = vadd.f32 %v1277, %v1485
        %v1552 = vadd.f32 %v1278, %v1488
        %v1553 = vadd.f32 %v1279, %v1493
        %v1554 = vadd.f32 %v1280, %v1496
        %v1555 = vadd.f32 %v1281, %v1501
        %v1556 = vadd.f32 %v1282, %v1504
        %v1557 = vadd.f32 %v1283, %v1509
        %v1558 = vadd.f32 %v1284, %v1512
        %v1559 = vadd.f32 %v1285, %v1517
        %v1560 = vadd.f32 %v1286, %v1520
        %v1561 = vadd.f32 %v1287, %v1525
        %v1562 = vadd.f32 %v1288, %v1528
        %1563 = vst.msk [vmem:[#allocation2] sm:$0xff] %vm586, %v1531
        %1564 = vst.msk [vmem:[#allocation2 + $0x8] sm:$0xff] %vm586, %v1532
        %1565 = vst.msk [vmem:[#allocation2 + $0x10] sm:$0xff] %vm586, %v1533
        %1566 = vst.msk [vmem:[#allocation2 + $0x18] sm:$0xff] %vm586, %v1534
        %1567 = vst.msk [vmem:[#allocation2 + $0x20] sm:$0xff] %vm586, %v1535
        %1568 = vst.msk [vmem:[#allocation2 + $0x28] sm:$0xff] %vm586, %v1536
        %1569 = vst.msk [vmem:[#allocation2 + $0x30] sm:$0xff] %vm586, %v1537
        %1570 = vst.msk [vmem:[#allocation2 + $0x38] sm:$0xff] %vm586, %v1538
        %1571 = vst.msk [vmem:[#allocation2 + $0x40] sm:$0xff] %vm586, %v1539
        %1572 = vst.msk [vmem:[#allocation2 + $0x48] sm:$0xff] %vm586, %v1540
        %1573 = vst.msk [vmem:[#allocation2 + $0x50] sm:$0xff] %vm586, %v1541
        %1574 = vst.msk [vmem:[#allocation2 + $0x58] sm:$0xff] %vm586, %v1542
        %1575 = vst.msk [vmem:[#allocation2 + $0x60] sm:$0xff] %vm586, %v1543
        %1576 = vst.msk [vmem:[#allocation2 + $0x68] sm:$0xff] %vm586, %v1544
        %1577 = vst.msk [vmem:[#allocation2 + $0x70] sm:$0xff] %vm586, %v1545
        %1578 = vst.msk [vmem:[#allocation2 + $0x78] sm:$0xff] %vm586, %v1546
        %1579 = vst.msk [vmem:[#allocation2 + $0x80] sm:$0xff] %vm586, %v1547
        %1580 = vst.msk [vmem:[#allocation2 + $0x88] sm:$0xff] %vm586, %v1548
        %1581 = vst.msk [vmem:[#allocation2 + $0x90] sm:$0xff] %vm586, %v1549
        %1582 = vst.msk [vmem:[#allocation2 + $0x98] sm:$0xff] %vm586, %v1550
        %1583 = vst.msk [vmem:[#allocation2 + $0xa0] sm:$0xff] %vm586, %v1551
        %1584 = vst.msk [vmem:[#allocation2 + $0xa8] sm:$0xff] %vm586, %v1552
        %1585 = vst.msk [vmem:[#allocation2 + $0xb0] sm:$0xff] %vm586, %v1553
        %1586 = vst.msk [vmem:[#allocation2 + $0xb8] sm:$0xff] %vm586, %v1554
        %1587 = vst.msk [vmem:[#allocation2 + $0xc0] sm:$0xff] %vm586, %v1555
        %1588 = vst.msk [vmem:[#allocation2 + $0xc8] sm:$0xff] %vm586, %v1556
        %1589 = vst.msk [vmem:[#allocation2 + $0xd0] sm:$0xff] %vm586, %v1557
        %1590 = vst.msk [vmem:[#allocation2 + $0xd8] sm:$0xff] %vm586, %v1558
        %1591 = vst.msk [vmem:[#allocation2 + $0xe0] sm:$0xff] %vm586, %v1559
        %1592 = vst.msk [vmem:[#allocation2 + $0xe8] sm:$0xff] %vm586, %v1560
        %1593 = vst.msk [vmem:[#allocation2 + $0xf0] sm:$0xff] %vm586, %v1561
        %1594 = vst.msk [vmem:[#allocation2 + $0xf8] sm:$0xff] %vm586, %v1562
        // Predicated region
        $region45: #{tpu_custom_call.1} parent=39 // pred_check
          %p1595 = pneg %p397
        $region46: #{tpu_custom_call.1} parent=39 // pred_check_branch
          %1597 = sbr.rel (%p1595) target = $region48
        $region47: #{tpu_custom_call.1} parent=39 // pred_region
          %v1598 = vld [vmem:[#allocation2] sm:$0xff]
          %v1599 = vld [vmem:[#allocation2 + $0x8] sm:$0xff]
          %v1600 = vld [vmem:[#allocation2 + $0x10] sm:$0xff]
          %v1601 = vld [vmem:[#allocation2 + $0x18] sm:$0xff]
          %v1602 = vld [vmem:[#allocation2 + $0x20] sm:$0xff]
          %v1603 = vld [vmem:[#allocation2 + $0x28] sm:$0xff]
          %v1604 = vld [vmem:[#allocation2 + $0x30] sm:$0xff]
          %v1605 = vld [vmem:[#allocation2 + $0x38] sm:$0xff]
          %v1606 = vld [vmem:[#allocation2 + $0x40] sm:$0xff]
          %v1607 = vld [vmem:[#allocation2 + $0x48] sm:$0xff]
          %v1608 = vld [vmem:[#allocation2 + $0x50] sm:$0xff]
          %v1609 = vld [vmem:[#allocation2 + $0x58] sm:$0xff]
          %v1610 = vld [vmem:[#allocation2 + $0x60] sm:$0xff]
          %v1611 = vld [vmem:[#allocation2 + $0x68] sm:$0xff]
          %v1612 = vld [vmem:[#allocation2 + $0x70] sm:$0xff]
          %v1613 = vld [vmem:[#allocation2 + $0x78] sm:$0xff]
          %v1614 = vld [vmem:[#allocation2 + $0x80] sm:$0xff]
          %v1615 = vld [vmem:[#allocation2 + $0x88] sm:$0xff]
          %v1616 = vld [vmem:[#allocation2 + $0x90] sm:$0xff]
          %v1617 = vld [vmem:[#allocation2 + $0x98] sm:$0xff]
          %v1618 = vld [vmem:[#allocation2 + $0xa0] sm:$0xff]
          %v1619 = vld [vmem:[#allocation2 + $0xa8] sm:$0xff]
          %v1620 = vld [vmem:[#allocation2 + $0xb0] sm:$0xff]
          %v1621 = vld [vmem:[#allocation2 + $0xb8] sm:$0xff]
          %v1622 = vld [vmem:[#allocation2 + $0xc0] sm:$0xff]
          %v1623 = vld [vmem:[#allocation2 + $0xc8] sm:$0xff]
          %v1624 = vld [vmem:[#allocation2 + $0xd0] sm:$0xff]
          %v1625 = vld [vmem:[#allocation2 + $0xd8] sm:$0xff]
          %v1626 = vld [vmem:[#allocation2 + $0xe0] sm:$0xff]
          %v1627 = vld [vmem:[#allocation2 + $0xe8] sm:$0xff]
          %v1628 = vld [vmem:[#allocation2 + $0xf0] sm:$0xff]
          %v1629 = vld [vmem:[#allocation2 + $0xf8] sm:$0xff]
          %1630 = vst.msk [vmem:[%s389] sm:$0xff] %vm586, %v1598
          %1631 = vst.msk [vmem:[%s389 + $0x8] sm:$0xff] %vm586, %v1599
          %1632 = vst.msk [vmem:[%s389 + $0x10] sm:$0xff] %vm586, %v1600
          %1633 = vst.msk [vmem:[%s389 + $0x18] sm:$0xff] %vm586, %v1601
          %1634 = vst.msk [vmem:[%s389 + $0x20] sm:$0xff] %vm586, %v1602
          %1635 = vst.msk [vmem:[%s389 + $0x28] sm:$0xff] %vm586, %v1603
          %1636 = vst.msk [vmem:[%s389 + $0x30] sm:$0xff] %vm586, %v1604
          %1637 = vst.msk [vmem:[%s389 + $0x38] sm:$0xff] %vm586, %v1605
          %1638 = vst.msk [vmem:[%s389 + $0x40] sm:$0xff] %vm586, %v1606
          %1639 = vst.msk [vmem:[%s389 + $0x48] sm:$0xff] %vm586, %v1607
          %1640 = vst.msk [vmem:[%s389 + $0x50] sm:$0xff] %vm586, %v1608
          %1641 = vst.msk [vmem:[%s389 + $0x58] sm:$0xff] %vm586, %v1609
          %1642 = vst.msk [vmem:[%s389 + $0x60] sm:$0xff] %vm586, %v1610
          %1643 = vst.msk [vmem:[%s389 + $0x68] sm:$0xff] %vm586, %v1611
          %1644 = vst.msk [vmem:[%s389 + $0x70] sm:$0xff] %vm586, %v1612
          %1645 = vst.msk [vmem:[%s389 + $0x78] sm:$0xff] %vm586, %v1613
          %1646 = vst.msk [vmem:[%s389 + $0x80] sm:$0xff] %vm586, %v1614
          %1647 = vst.msk [vmem:[%s389 + $0x88] sm:$0xff] %vm586, %v1615
          %1648 = vst.msk [vmem:[%s389 + $0x90] sm:$0xff] %vm586, %v1616
          %1649 = vst.msk [vmem:[%s389 + $0x98] sm:$0xff] %vm586, %v1617
          %1650 = vst.msk [vmem:[%s389 + $0xa0] sm:$0xff] %vm586, %v1618
          %1651 = vst.msk [vmem:[%s389 + $0xa8] sm:$0xff] %vm586, %v1619
          %1652 = vst.msk [vmem:[%s389 + $0xb0] sm:$0xff] %vm586, %v1620
          %1653 = vst.msk [vmem:[%s389 + $0xb8] sm:$0xff] %vm586, %v1621
          %1654 = vst.msk [vmem:[%s389 + $0xc0] sm:$0xff] %vm586, %v1622
          %1655 = vst.msk [vmem:[%s389 + $0xc8] sm:$0xff] %vm586, %v1623
          %1656 = vst.msk [vmem:[%s389 + $0xd0] sm:$0xff] %vm586, %v1624
          %1657 = vst.msk [vmem:[%s389 + $0xd8] sm:$0xff] %vm586, %v1625
          %1658 = vst.msk [vmem:[%s389 + $0xe0] sm:$0xff] %vm586, %v1626
          %1659 = vst.msk [vmem:[%s389 + $0xe8] sm:$0xff] %vm586, %v1627
          %1660 = vst.msk [vmem:[%s389 + $0xf0] sm:$0xff] %vm586, %v1628
          %1661 = vst.msk [vmem:[%s389 + $0xf8] sm:$0xff] %vm586, %v1629
        $region48: #{tpu_custom_call.1} parent=39 // pred_fallthru
          _
      $region40: #{tpu_custom_call.1} parent=35 // pred_fallthru
        _
      %s1662 = smul.u32 32, %s31
      %p1663 = scmp.lt.s32.totalorder %s1662, 159
      %s1664 = scalar_select %p1663, %s1662, 159
      %s1665 = smul.addr %s1664, 8
      %s1666 = scalar_lea.vmem %s6, %s1665
      // Predicated region
      $region49: #{tpu_custom_call.1} parent=35 // pred_check
        %p1667 = pneg %p185
      $region50: #{tpu_custom_call.1} parent=35 // pred_check_branch
        %1669 = sbr.rel (%p1667) target = $region52
      $region51: #{tpu_custom_call.1} parent=35 // pred_region
        %s1670 = smul.u32 32, %s31
      $region52: #{tpu_custom_call.1} parent=35 // pred_fallthru
        _
    $region36: #{tpu_custom_call.1} parent=5 // pred_fallthru
      _
    %p1671 = scmp.le.s32.totalorder 2, %s22
    // Predicated region
    $region53: #{tpu_custom_call.1} parent=5 // pred_check
      %p1672 = pneg %p1671
    $region54: #{tpu_custom_call.1} parent=5 // pred_check_branch
      %1674 = sbr.rel (%p1672) target = $region56
    $region55: #{tpu_custom_call.1} parent=5 // pred_region
      %s1675 = ssub.s32 %s22, 2
      // Predicated region
      $region57: #{tpu_custom_call.1} parent=55 // pred_check
        %p1676 = pneg %p191
      $region58: #{tpu_custom_call.1} parent=55 // pred_check_branch
        %1678 = sbr.rel (%p1676) target = $region60
      $region59: #{tpu_custom_call.1} parent=55 // pred_region
        %s1679 = smul.u32 32, %s33
        %p1680 = scmp.lt.s32.totalorder %s1679, 159
        %s1681 = scalar_select %p1680, %s1679, 159
        %s1682 = smul.addr %s1681, 8
        %s1683 = scalar_lea.vmem %s6, %s1682
      $region60: #{tpu_custom_call.1} parent=55 // pred_fallthru
        _
    $region56: #{tpu_custom_call.1} parent=5 // pred_fallthru
      _
  $region6: #{tpu_custom_call.1} parent=0 // loop_footer
    %s26 = sadd.s32 1, %s22
  $region7: #{tpu_custom_call.1} parent=0 // loop_footer_branch
    %21 = sbr.rel target = $region3
  $region8: #{tpu_custom_call.1} parent=0 // loop_exit
    _

</llo_original>
